<compile_context>
chip_gen: v7x
topology: tpu7x:2x2x1
jax: 0.10.0
libtpu: 0.0.40
codegen_flags: <defaults>
</compile_context>

<pallas_src>
import functools

import jax
import jax.numpy as jnp
import numpy as np
from jax import lax
from jax.experimental import pallas as pl
from jax.experimental.pallas import tpu as pltpu


def trittention_kernel(xf_ref, xq_ref, wkv_ref, bkv_ref, wq_ref, bq_ref,
                       wout_ref, bout_ref, out_ref, *, mxu_dtype):
    qi = pl.program_id(1)          # q-tile index
    h = pl.program_id(2)           # head index (innermost, accumulator axis)

    dh = wq_ref.shape[-1]
    S = xf_ref.shape[1]
    TQ = xq_ref.shape[1]
    inv_dh = jnp.float32(1.0 / dh)
    mask_add = jnp.float32(-1000000.0) * inv_dh   # IGNORE is applied before /d_head

    xf = xf_ref[0].astype(mxu_dtype)              # (S, Dm)   full sequence (keys/values)
    xq = xq_ref[0].astype(mxu_dtype)              # (TQ, Dm)  query tile

    # ---- fused projections: one lane-dense matmul for [k1 | k2 | v1 | v2], one for q ----
    kv = jnp.dot(xf, wkv_ref[0].astype(mxu_dtype),
                 preferred_element_type=jnp.float32) + bkv_ref[0]      # (S, 4*dh) f32
    k1 = kv[:, 0 * dh:1 * dh]
    k2 = kv[:, 1 * dh:2 * dh]
    v1 = kv[:, 2 * dh:3 * dh]
    v2 = kv[:, 3 * dh:4 * dh]

    q = jnp.dot(xq, wq_ref[0].astype(mxu_dtype),
                preferred_element_type=jnp.float32) + bq_ref[0]        # (TQ, dh) f32

    # ---- score matmuls with the 1/d_head scale folded into the operands ----
    k2m = k2.astype(mxu_dtype)
    qk = jnp.dot((q * inv_dh).astype(mxu_dtype), k2m.T,
                 preferred_element_type=jnp.float32)                   # (TQ, S)
    kk = jnp.dot((k1 * inv_dh).astype(mxu_dtype), k2m.T,
                 preferred_element_type=jnp.float32)                   # (S, S)

    # ---- 2D additive causal mask: key position p is masked when p > global query q ----
    qpos = qi * TQ + lax.broadcasted_iota(jnp.int32, (TQ, S), 0)
    kpos = lax.broadcasted_iota(jnp.int32, (TQ, S), 1)
    addmask = jnp.where(kpos > qpos, mask_add, jnp.float32(0.0))       # (TQ, S)

    # score[i, s, t] = kk[s,t]/dh + qk[i,t]/dh + mask[i,t] + mask[i,s]
    score = kk[None, :, :] + (qk + addmask)[:, None, :] + addmask[:, :, None]  # (TQ,S,S)

    # ---- joint softmax over (s,t); normalization deferred ----
    m = jnp.max(jnp.max(score, axis=2, keepdims=True), axis=1, keepdims=True)  # (TQ,1,1)
    e = jnp.exp(score - m)                                                      # (TQ,S,S)
    den = jnp.sum(jnp.sum(e, axis=2, keepdims=True), axis=1, keepdims=True)     # (TQ,1,1)

    # ---- gated value contraction with unnormalized weights ----
    a = jnp.dot(e.reshape(TQ * S, S).astype(mxu_dtype), v2.astype(mxu_dtype),
                preferred_element_type=jnp.float32).reshape(TQ, S, dh)          # (TQ,S,dh)
    u = v1 * jax.nn.sigmoid(v1)                                                 # silu(v1)
    z = jnp.sum(a * u[None, :, :], axis=1)                                      # (TQ, dh)
    inv_den = pl.reciprocal(den, approx=True).reshape(TQ, 1)
    z = z * inv_den                                                             # normalize

    # ---- per-head output projection, accumulated across the head grid axis ----
    @pl.when(h == 0)
    def _():
        out_ref[...] = jnp.broadcast_to(bout_ref[...], out_ref.shape)

    out_ref[0] = out_ref[0] + jnp.dot(z.astype(mxu_dtype),
                                      wout_ref[0].astype(mxu_dtype),
                                      preferred_element_type=jnp.float32)


def _pick_q_tile(seq_len, d_head, budget_bytes=16 * 1024 * 1024):
    """Largest multiple-of-8 q-tile dividing seq_len whose intermediates fit the budget."""
    if seq_len % 8 != 0:
        return seq_len
    per_row = seq_len * seq_len * (4 + 4 + 2) + seq_len * d_head * 4
    tq = (budget_bytes // max(per_row, 1)) // 8 * 8
    tq = int(max(8, min(tq, seq_len)))
    while tq > 8 and seq_len % tq != 0:
        tq -= 8
    if seq_len % tq != 0:
        return seq_len
    return tq


def trittention_pallas(x, params, *, q_tile=None, mxu_dtype=jnp.bfloat16):
    (w_kv, b_kv, w_q, b_q, w_out, b_out) = params
    B, S, Dm = x.shape
    H, _, dh = w_q.shape

    if q_tile is None:
        q_tile = _pick_q_tile(S, dh)
    q_tile = min(q_tile, S)
    if S % q_tile != 0:
        q_tile = S
    n_q = S // q_tile

    # rough VMEM footprint of one grid step (score, e, bf16 e copy, a, projections, I/O)
    f32 = 4
    est = (q_tile * S * S * (f32 + f32 + 2)
           + q_tile * S * dh * f32
           + S * 5 * dh * f32 * 3
           + 2 * (S * Dm + q_tile * Dm + Dm * 5 * dh + 5 * dh + dh * Dm + Dm) * f32
           + 2 * q_tile * Dm * f32)
    vmem_limit = int(min(64 * 1024 * 1024, max(32 * 1024 * 1024, 2 * est)))

    kernel = functools.partial(trittention_kernel, mxu_dtype=mxu_dtype)

    grid_spec = pltpu.PrefetchScalarGridSpec(
        num_scalar_prefetch=0,
        grid=(B, n_q, H),
        in_specs=[
            pl.BlockSpec((1, S, Dm), lambda b, qi, h: (b, 0, 0)),        # x (full seq)
            pl.BlockSpec((1, q_tile, Dm), lambda b, qi, h: (b, qi, 0)),  # x (q tile)
            pl.BlockSpec((1, Dm, 4 * dh), lambda b, qi, h: (h, 0, 0)),   # W_[k1|k2|v1|v2]
            pl.BlockSpec((1, 1, 4 * dh), lambda b, qi, h: (h, 0, 0)),    # b_[k1|k2|v1|v2]
            pl.BlockSpec((1, Dm, dh), lambda b, qi, h: (h, 0, 0)),       # W_q
            pl.BlockSpec((1, 1, dh), lambda b, qi, h: (h, 0, 0)),        # b_q
            pl.BlockSpec((1, dh, Dm), lambda b, qi, h: (h, 0, 0)),       # W_out per head
            pl.BlockSpec((1, Dm), lambda b, qi, h: (0, 0)),              # b_out
        ],
        out_specs=pl.BlockSpec((1, q_tile, Dm), lambda b, qi, h: (b, qi, 0)),
    )

    return pl.pallas_call(
        kernel,
        out_shape=jax.ShapeDtypeStruct((B, S, Dm), jnp.float32),
        grid_spec=grid_spec,
        compiler_params=pltpu.CompilerParams(
            dimension_semantics=("parallel", "parallel", "arbitrary"),
            vmem_limit_bytes=vmem_limit),
    )(x, x, w_kv, b_kv, w_q, b_q, w_out, b_out)


def init_params(key, d_model, n_heads, d_head):
    """Deterministic synthetic parameters matching the nn.Linear shapes (in,out layout)."""
    H, dh, Dm = n_heads, d_head, d_model
    ks = jax.random.split(key, 8)
    s_in = 1.0 / np.sqrt(Dm)
    Wkkq = jax.random.normal(ks[0], (Dm, 3 * H * dh), jnp.float32) * s_in
    bkkq = jax.random.normal(ks[1], (3 * H * dh,), jnp.float32) * 0.02
    WV1 = jax.random.normal(ks[2], (Dm, H * dh), jnp.float32) * s_in
    bV1 = jax.random.normal(ks[3], (H * dh,), jnp.float32) * 0.02
    WV2 = jax.random.normal(ks[4], (Dm, H * dh), jnp.float32) * s_in
    bV2 = jax.random.normal(ks[5], (H * dh,), jnp.float32) * 0.02
    WOut = jax.random.normal(ks[6], (H * dh, Dm), jnp.float32) * (1.0 / np.sqrt(H * dh))
    bOut = jax.random.normal(ks[7], (Dm,), jnp.float32) * 0.02
    return Wkkq, bkkq, WV1, bV1, WV2, bV2, WOut, bOut


def pack_params(Wkkq, bkkq, WV1, bV1, WV2, bV2, WOut, bOut, n_heads, d_head):
    """Repack nn.Linear weights into the fused per-head layout used by the kernel."""
    H, dh = n_heads, d_head
    Dm = Wkkq.shape[0]

    def split_w(W):   # (Dm, H*dh) -> (H, Dm, dh), head-major as in '(h d)'
        return jnp.transpose(W.reshape(Dm, H, dh), (1, 0, 2))

    def split_b(b):   # (H*dh,) -> (H, 1, dh)
        return b.reshape(H, 1, dh)

    Wk1, Wk2, Wq = [split_w(Wkkq[:, i * H * dh:(i + 1) * H * dh]) for i in range(3)]
    bk1, bk2, bq = [split_b(bkkq[i * H * dh:(i + 1) * H * dh]) for i in range(3)]
    Wv1, Wv2 = split_w(WV1), split_w(WV2)
    bv1, bv2 = split_b(bV1), split_b(bV2)

    w_kv = jnp.concatenate([Wk1, Wk2, Wv1, Wv2], axis=-1)   # (H, Dm, 4*dh)
    b_kv = jnp.concatenate([bk1, bk2, bv1, bv2], axis=-1)   # (H, 1, 4*dh)
    w_out = WOut.reshape(H, dh, Dm)                         # (H, dh, Dm)
    b_out = bOut.reshape(1, Dm)                             # (1, Dm)
    return (w_kv, b_kv, Wq, bq, w_out, b_out)


def reference_forward(x, Wkkq, bkkq, WV1, bV1, WV2, bV2, WOut, bOut, n_heads, d_head):
    """Pure-JAX transliteration of the PyTorch forward (for correctness checking)."""
    B, T, Dm = x.shape
    H, dh = n_heads, d_head
    kkq = x @ Wkkq + bkkq
    k1, k2, q = jnp.split(kkq, 3, axis=-1)
    sh = lambda y: y.reshape(B, T, H, dh)
    k1, k2, q = sh(k1), sh(k2), sh(q)
    v1 = sh(x @ WV1 + bV1)
    v2 = sh(x @ WV2 + bV2)
    qk = jnp.einsum('btnh,bqnh->bntq', k2, q)
    kk = jnp.einsum('bsnh,btnh->bnst', k1, k2)
    score = qk[:, :, None] + kk[..., None]                       # (b, n, s, t, q)
    s_idx = jnp.arange(T)[:, None, None]
    t_idx = jnp.arange(T)[None, :, None]
    q_idx = jnp.arange(T)[None, None, :]
    mask = (s_idx > q_idx) | (t_idx > q_idx)
    score = jnp.where(mask[None, None], jnp.float32(-1000000.0), score)
    score = jnp.transpose(score, (0, 1, 4, 2, 3)).reshape(B, H, T, T * T) / dh
    p = jax.nn.softmax(score, axis=-1)
    v = jax.nn.silu(v1)[:, :, None] * v2[:, None]                # (b, s, t, n, h)
    v = jnp.transpose(v, (0, 3, 4, 1, 2)).reshape(B, H, dh, T * T)
    z = jnp.einsum('bnql,bnhl->bqnh', p, v)
    return z.reshape(B, T, H * dh) @ WOut + bOut


if __name__ == "__main__":
    key = jax.random.PRNGKey(0)
    kx1, kx2, kp = jax.random.split(key, 3)

    B, Dm, H, dh = 2, 32, 2, 16   # batch, d_model, n_heads, d_head
    raw_params = init_params(kp, Dm, H, dh)
    packed = pack_params(*raw_params, n_heads=H, d_head=dh)

    # Test 1: single q-tile (S == q_tile)
    S1 = 8
    x1 = jax.random.normal(kx1, (B, S1, Dm), jnp.float32)
    out1 = jax.block_until_ready(trittention_pallas(x1, packed))
    ref1 = jax.block_until_ready(reference_forward(x1, *raw_params, n_heads=H, d_head=dh))
    assert out1.shape == (B, S1, Dm)
    if not np.allclose(np.asarray(out1), np.asarray(ref1), rtol=5e-2, atol=5e-2):
        raise AssertionError("Pallas output (S=8) does not match the JAX reference")

    # Test 2: exercise the q-tile grid axis (S=16, q_tile=8)
    S2 = 16
    x2 = jax.random.normal(kx2, (B, S2, Dm), jnp.float32)
    out2 = jax.block_until_ready(trittention_pallas(x2, packed, q_tile=8))
    ref2 = jax.block_until_ready(reference_forward(x2, *raw_params, n_heads=H, d_head=dh))
    assert out2.shape == (B, S2, Dm)
    if not np.allclose(np.asarray(out2), np.asarray(ref2), rtol=5e-2, atol=5e-2):
        raise AssertionError("Pallas output (S=16, q_tile=8) does not match the JAX reference")

    print("KERNEL_OK")
</pallas_src>

<mosaic_0001>
module attributes {stable_mosaic.version = 11 : i64} {
  func.func @trittention_kernel(%arg0: i32, %arg1: i32, %arg2: i32, %arg3: memref<1x8x32xf32, #tpu.memory_space<vmem>>, %arg4: memref<1x8x32xf32, #tpu.memory_space<vmem>>, %arg5: memref<1x32x64xf32, #tpu.memory_space<vmem>>, %arg6: memref<1x1x64xf32, #tpu.memory_space<vmem>>, %arg7: memref<1x32x16xf32, #tpu.memory_space<vmem>>, %arg8: memref<1x1x16xf32, #tpu.memory_space<vmem>>, %arg9: memref<1x16x32xf32, #tpu.memory_space<vmem>>, %arg10: memref<1x32xf32, #tpu.memory_space<vmem>>, %arg11: memref<1x8x32xf32, #tpu.memory_space<vmem>>) attributes {dimension_semantics = [#tpu.dimension_semantics<parallel>, #tpu.dimension_semantics<parallel>, #tpu.dimension_semantics<arbitrary>], iteration_bounds = array<i64: 2, 1, 2>, scalar_prefetch = 0 : i64, scratch_operands = 0 : i64, tpu.core_type = #tpu.core_type<tc>, window_params = [{transform_indices = @transform_0, window_bounds = array<i64: 1, 8, 32>}, {transform_indices = @transform_1, window_bounds = array<i64: 1, 8, 32>}, {transform_indices = @transform_2, window_bounds = array<i64: 1, 32, 64>}, {transform_indices = @transform_3, window_bounds = array<i64: 1, 1, 64>}, {transform_indices = @transform_4, window_bounds = array<i64: 1, 32, 16>}, {transform_indices = @transform_5, window_bounds = array<i64: 1, 1, 16>}, {transform_indices = @transform_6, window_bounds = array<i64: 1, 16, 32>}, {pipeline_mode = #tpu.pipeline_mode<synchronous>, transform_indices = @transform_7, window_bounds = array<i64: 1, 32>}, {transform_indices = @transform_8, window_bounds = array<i64: 1, 8, 32>}]} {
    %cst = arith.constant -1.000000e+06 : f32
    %cst_0 = arith.constant 6.250000e-02 : f32
    %0 = arith.mulf %cst, %cst_0 : f32
    %c0 = arith.constant 0 : index
    %c0_1 = arith.constant 0 : index
    %c0_2 = arith.constant 0 : index
    %1 = vector.load %arg3[%c0, %c0_1, %c0_2] : memref<1x8x32xf32, #tpu.memory_space<vmem>>, vector<1x8x32xf32>
    %2 = vector.shape_cast %1 : vector<1x8x32xf32> to vector<8x32xf32>
    %3 = arith.truncf %2 : vector<8x32xf32> to vector<8x32xbf16>
    %c0_3 = arith.constant 0 : index
    %c0_4 = arith.constant 0 : index
    %c0_5 = arith.constant 0 : index
    %4 = vector.load %arg4[%c0_3, %c0_4, %c0_5] : memref<1x8x32xf32, #tpu.memory_space<vmem>>, vector<1x8x32xf32>
    %5 = vector.shape_cast %4 : vector<1x8x32xf32> to vector<8x32xf32>
    %6 = arith.truncf %5 : vector<8x32xf32> to vector<8x32xbf16>
    %c0_6 = arith.constant 0 : index
    %c0_7 = arith.constant 0 : index
    %c0_8 = arith.constant 0 : index
    %7 = vector.load %arg5[%c0_6, %c0_7, %c0_8] : memref<1x32x64xf32, #tpu.memory_space<vmem>>, vector<1x32x64xf32>
    %8 = vector.shape_cast %7 : vector<1x32x64xf32> to vector<32x64xf32>
    %9 = arith.truncf %8 : vector<32x64xf32> to vector<32x64xbf16>
    %cst_9 = arith.constant dense<0.000000e+00> : vector<8x64xf32>
    %10 = tpu.matmul %3, %9, %cst_9 {dimension_numbers = #tpu.dot_dimension_numbers<[1], [0], [0], [1], [0, 0, 1, 1], [], []>} : vector<8x32xbf16>, vector<32x64xbf16>, vector<8x64xf32> -> vector<8x64xf32>
    %c0_10 = arith.constant 0 : index
    %c0_11 = arith.constant 0 : index
    %c0_12 = arith.constant 0 : index
    %11 = vector.load %arg6[%c0_10, %c0_11, %c0_12] : memref<1x1x64xf32, #tpu.memory_space<vmem>>, vector<1x1x64xf32>
    %12 = vector.shape_cast %11 : vector<1x1x64xf32> to vector<1x64xf32>
    %13 = vector.broadcast %12 : vector<1x64xf32> to vector<8x64xf32>
    %14 = arith.addf %10, %13 : vector<8x64xf32>
    %15 = vector.extract_strided_slice %14 {offsets = [0, 0], sizes = [8, 16], strides = [1, 1]} : vector<8x64xf32> to vector<8x16xf32>
    %16 = vector.extract_strided_slice %14 {offsets = [0, 16], sizes = [8, 16], strides = [1, 1]} : vector<8x64xf32> to vector<8x16xf32>
    %17 = vector.extract_strided_slice %14 {offsets = [0, 32], sizes = [8, 16], strides = [1, 1]} : vector<8x64xf32> to vector<8x16xf32>
    %18 = vector.extract_strided_slice %14 {offsets = [0, 48], sizes = [8, 16], strides = [1, 1]} : vector<8x64xf32> to vector<8x16xf32>
    %c0_13 = arith.constant 0 : index
    %c0_14 = arith.constant 0 : index
    %c0_15 = arith.constant 0 : index
    %19 = vector.load %arg7[%c0_13, %c0_14, %c0_15] : memref<1x32x16xf32, #tpu.memory_space<vmem>>, vector<1x32x16xf32>
    %20 = vector.shape_cast %19 : vector<1x32x16xf32> to vector<32x16xf32>
    %21 = arith.truncf %20 : vector<32x16xf32> to vector<32x16xbf16>
    %cst_16 = arith.constant dense<0.000000e+00> : vector<8x16xf32>
    %22 = tpu.matmul %6, %21, %cst_16 {dimension_numbers = #tpu.dot_dimension_numbers<[1], [0], [0], [1], [0, 0, 1, 1], [], []>} : vector<8x32xbf16>, vector<32x16xbf16>, vector<8x16xf32> -> vector<8x16xf32>
    %c0_17 = arith.constant 0 : index
    %c0_18 = arith.constant 0 : index
    %c0_19 = arith.constant 0 : index
    %23 = vector.load %arg8[%c0_17, %c0_18, %c0_19] : memref<1x1x16xf32, #tpu.memory_space<vmem>>, vector<1x1x16xf32>
    %24 = vector.shape_cast %23 : vector<1x1x16xf32> to vector<1x16xf32>
    %25 = vector.broadcast %24 : vector<1x16xf32> to vector<8x16xf32>
    %26 = arith.addf %22, %25 : vector<8x16xf32>
    %27 = arith.truncf %16 : vector<8x16xf32> to vector<8x16xbf16>
    %cst_20 = arith.constant 6.250000e-02 : f32
    %28 = vector.broadcast %cst_20 : f32 to vector<8x16xf32>
    %29 = arith.mulf %26, %28 : vector<8x16xf32>
    %30 = arith.truncf %29 : vector<8x16xf32> to vector<8x16xbf16>
    %31 = tpu.transpose %27, [1, 0] : vector<8x16xbf16> -> vector<16x8xbf16>
    %cst_21 = arith.constant dense<0.000000e+00> : vector<8x8xf32>
    %32 = tpu.matmul %30, %31, %cst_21 {dimension_numbers = #tpu.dot_dimension_numbers<[1], [0], [0], [1], [0, 0, 1, 1], [], []>} : vector<8x16xbf16>, vector<16x8xbf16>, vector<8x8xf32> -> vector<8x8xf32>
    %cst_22 = arith.constant 6.250000e-02 : f32
    %33 = vector.broadcast %cst_22 : f32 to vector<8x16xf32>
    %34 = arith.mulf %15, %33 : vector<8x16xf32>
    %35 = arith.truncf %34 : vector<8x16xf32> to vector<8x16xbf16>
    %36 = tpu.transpose %27, [1, 0] : vector<8x16xbf16> -> vector<16x8xbf16>
    %cst_23 = arith.constant dense<0.000000e+00> : vector<8x8xf32>
    %37 = tpu.matmul %35, %36, %cst_23 {dimension_numbers = #tpu.dot_dimension_numbers<[1], [0], [0], [1], [0, 0, 1, 1], [], []>} : vector<8x16xbf16>, vector<16x8xbf16>, vector<8x8xf32> -> vector<8x8xf32>
    %c8_i32 = arith.constant 8 : i32
    %38 = arith.muli %arg1, %c8_i32 : i32
    %39 = tpu.iota {dimensions = array<i32: 0>} : vector<8x8xi32>
    %40 = vector.broadcast %38 : i32 to vector<8x8xi32>
    %41 = arith.addi %40, %39 : vector<8x8xi32>
    %42 = tpu.iota {dimensions = array<i32: 1>} : vector<8x8xi32>
    %43 = arith.cmpi sgt, %42, %41 : vector<8x8xi32>
    %cst_24 = arith.constant 0.000000e+00 : f32
    %44 = vector.broadcast %0 : f32 to vector<8x8xf32>
    %45 = vector.broadcast %cst_24 : f32 to vector<8x8xf32>
    %46 = arith.select %43, %44, %45 : vector<8x8xi1>, vector<8x8xf32>
    %47 = vector.shape_cast %37 : vector<8x8xf32> to vector<1x8x8xf32>
    %48 = arith.addf %32, %46 : vector<8x8xf32>
    %49 = vector.shape_cast %48 : vector<8x8xf32> to vector<8x1x8xf32>
    %50 = vector.broadcast %47 : vector<1x8x8xf32> to vector<8x8x8xf32>
    %51 = vector.broadcast %49 : vector<8x1x8xf32> to vector<8x8x8xf32>
    %52 = arith.addf %50, %51 : vector<8x8x8xf32>
    %53 = vector.shape_cast %46 : vector<8x8xf32> to vector<8x8x1xf32>
    %54 = vector.broadcast %53 : vector<8x8x1xf32> to vector<8x8x8xf32>
    %55 = arith.addf %52, %54 : vector<8x8x8xf32>
    %cst_25 = arith.constant dense<0xFF800000> : vector<8x8xf32>
    %56 = vector.multi_reduction <maximumf>, %55, %cst_25 [2] : vector<8x8x8xf32> to vector<8x8xf32>
    %57 = vector.shape_cast %56 : vector<8x8xf32> to vector<8x8x1xf32>
    %cst_26 = arith.constant dense<0xFF800000> : vector<8x1xf32>
    %58 = vector.multi_reduction <maximumf>, %57, %cst_26 [1] : vector<8x8x1xf32> to vector<8x1xf32>
    %59 = vector.shape_cast %58 : vector<8x1xf32> to vector<8x1x1xf32>
    %60 = vector.broadcast %59 : vector<8x1x1xf32> to vector<8x8x8xf32>
    %61 = arith.subf %55, %60 : vector<8x8x8xf32>
    %62 = math.exp %61 : vector<8x8x8xf32>
    %cst_27 = arith.constant dense<0.000000e+00> : vector<8x8xf32>
    %63 = vector.multi_reduction <add>, %62, %cst_27 [2] : vector<8x8x8xf32> to vector<8x8xf32>
    %64 = vector.shape_cast %63 : vector<8x8xf32> to vector<8x8x1xf32>
    %cst_28 = arith.constant dense<0.000000e+00> : vector<8x1xf32>
    %65 = vector.multi_reduction <add>, %64, %cst_28 [1] : vector<8x8x1xf32> to vector<8x1xf32>
    %66 = vector.shape_cast %65 : vector<8x1xf32> to vector<8x1x1xf32>
    %67 = vector.shape_cast %62 : vector<8x8x8xf32> to vector<64x8xf32>
    %68 = arith.truncf %67 : vector<64x8xf32> to vector<64x8xbf16>
    %69 = arith.truncf %18 : vector<8x16xf32> to vector<8x16xbf16>
    %cst_29 = arith.constant dense<0.000000e+00> : vector<64x16xf32>
    %70 = tpu.matmul %68, %69, %cst_29 {dimension_numbers = #tpu.dot_dimension_numbers<[1], [0], [0], [1], [0, 0, 1, 1], [], []>} : vector<64x8xbf16>, vector<8x16xbf16>, vector<64x16xf32> -> vector<64x16xf32>
    %71 = vector.shape_cast %70 : vector<64x16xf32> to vector<8x8x16xf32>
    %72 = arith.negf %17 : vector<8x16xf32>
    %73 = math.exp %72 : vector<8x16xf32>
    %cst_30 = arith.constant 1.000000e+00 : f32
    %74 = vector.broadcast %cst_30 : f32 to vector<8x16xf32>
    %75 = arith.addf %74, %73 : vector<8x16xf32>
    %76 = arith.divf %74, %75 : vector<8x16xf32>
    %77 = arith.mulf %17, %76 : vector<8x16xf32>
    %78 = vector.shape_cast %77 : vector<8x16xf32> to vector<1x8x16xf32>
    %79 = vector.broadcast %78 : vector<1x8x16xf32> to vector<8x8x16xf32>
    %80 = arith.mulf %71, %79 : vector<8x8x16xf32>
    %cst_31 = arith.constant dense<0.000000e+00> : vector<8x16xf32>
    %81 = vector.multi_reduction <add>, %80, %cst_31 [1] : vector<8x8x16xf32> to vector<8x16xf32>
    %82 = tpu.reciprocal %66 {approx = true} : vector<8x1x1xf32> -> vector<8x1x1xf32>
    %83 = vector.shape_cast %82 : vector<8x1x1xf32> to vector<8x1xf32>
    %84 = vector.broadcast %83 : vector<8x1xf32> to vector<8x16xf32>
    %85 = arith.mulf %81, %84 : vector<8x16xf32>
    %c0_i32 = arith.constant 0 : i32
    %86 = arith.cmpi eq, %arg2, %c0_i32 : i32
    %87 = arith.extui %86 : i1 to i32
    %c0_i32_32 = arith.constant 0 : i32
    %88 = arith.cmpi ne, %87, %c0_i32_32 : i32
    scf.if %88 {
      %c0_43 = arith.constant 0 : index
      %c0_44 = arith.constant 0 : index
      %100 = vector.load %arg10[%c0_43, %c0_44] : memref<1x32xf32, #tpu.memory_space<vmem>>, vector<1x32xf32>
      %101 = vector.shape_cast %100 : vector<1x32xf32> to vector<1x1x32xf32>
      %102 = vector.broadcast %101 : vector<1x1x32xf32> to vector<1x8x32xf32>
      %c0_45 = arith.constant 0 : index
      %c0_46 = arith.constant 0 : index
      %c0_47 = arith.constant 0 : index
      %103 = vector.load %arg11[%c0_45, %c0_46, %c0_47] : memref<1x8x32xf32, #tpu.memory_space<vmem>>, vector<1x8x32xf32>
      tpu.vector_store %arg11[%c0_45, %c0_46, %c0_47], %102 {strides = array<i32>} : memref<1x8x32xf32, #tpu.memory_space<vmem>>, vector<1x8x32xf32>,
    } else {
    }
    %c0_33 = arith.constant 0 : index
    %c0_34 = arith.constant 0 : index
    %c0_35 = arith.constant 0 : index
    %89 = vector.load %arg11[%c0_33, %c0_34, %c0_35] : memref<1x8x32xf32, #tpu.memory_space<vmem>>, vector<1x8x32xf32>
    %90 = vector.shape_cast %89 : vector<1x8x32xf32> to vector<8x32xf32>
    %91 = arith.truncf %85 : vector<8x16xf32> to vector<8x16xbf16>
    %c0_36 = arith.constant 0 : index
    %c0_37 = arith.constant 0 : index
    %c0_38 = arith.constant 0 : index
    %92 = vector.load %arg9[%c0_36, %c0_37, %c0_38] : memref<1x16x32xf32, #tpu.memory_space<vmem>>, vector<1x16x32xf32>
    %93 = vector.shape_cast %92 : vector<1x16x32xf32> to vector<16x32xf32>
    %94 = arith.truncf %93 : vector<16x32xf32> to vector<16x32xbf16>
    %cst_39 = arith.constant dense<0.000000e+00> : vector<8x32xf32>
    %95 = tpu.matmul %91, %94, %cst_39 {dimension_numbers = #tpu.dot_dimension_numbers<[1], [0], [0], [1], [0, 0, 1, 1], [], []>} : vector<8x16xbf16>, vector<16x32xbf16>, vector<8x32xf32> -> vector<8x32xf32>
    %96 = arith.addf %90, %95 : vector<8x32xf32>
    %c0_40 = arith.constant 0 : index
    %c0_41 = arith.constant 0 : index
    %c0_42 = arith.constant 0 : index
    %97 = vector.load %arg11[%c0_40, %c0_41, %c0_42] : memref<1x8x32xf32, #tpu.memory_space<vmem>>, vector<1x8x32xf32>
    %98 = vector.shape_cast %97 : vector<1x8x32xf32> to vector<8x32xf32>
    %99 = vector.shape_cast %96 : vector<8x32xf32> to vector<1x8x32xf32>
    tpu.vector_store %arg11[%c0_40, %c0_41, %c0_42], %99 {strides = array<i32>} : memref<1x8x32xf32, #tpu.memory_space<vmem>>, vector<1x8x32xf32>,
    return
  }
  func.func @transform_0(%arg0: i32, %arg1: i32, %arg2: i32) -> (i32, i32, i32) {
    %c0_i32 = arith.constant 0 : i32
    %c0_i32_0 = arith.constant 0 : i32
    %c0_i32_1 = arith.constant 0 : i32
    return %arg0, %c0_i32, %c0_i32_0 : i32, i32, i32
  }
  func.func @transform_1(%arg0: i32, %arg1: i32, %arg2: i32) -> (i32, i32, i32) {
    %c0_i32 = arith.constant 0 : i32
    %c0_i32_0 = arith.constant 0 : i32
    return %arg0, %arg1, %c0_i32 : i32, i32, i32
  }
  func.func @transform_2(%arg0: i32, %arg1: i32, %arg2: i32) -> (i32, i32, i32) {
    %c0_i32 = arith.constant 0 : i32
    %c0_i32_0 = arith.constant 0 : i32
    %c0_i32_1 = arith.constant 0 : i32
    return %arg2, %c0_i32, %c0_i32_0 : i32, i32, i32
  }
  func.func @transform_3(%arg0: i32, %arg1: i32, %arg2: i32) -> (i32, i32, i32) {
    %c0_i32 = arith.constant 0 : i32
    %c0_i32_0 = arith.constant 0 : i32
    %c0_i32_1 = arith.constant 0 : i32
    return %arg2, %c0_i32, %c0_i32_0 : i32, i32, i32
  }
  func.func @transform_4(%arg0: i32, %arg1: i32, %arg2: i32) -> (i32, i32, i32) {
    %c0_i32 = arith.constant 0 : i32
    %c0_i32_0 = arith.constant 0 : i32
    %c0_i32_1 = arith.constant 0 : i32
    return %arg2, %c0_i32, %c0_i32_0 : i32, i32, i32
  }
  func.func @transform_5(%arg0: i32, %arg1: i32, %arg2: i32) -> (i32, i32, i32) {
    %c0_i32 = arith.constant 0 : i32
    %c0_i32_0 = arith.constant 0 : i32
    %c0_i32_1 = arith.constant 0 : i32
    return %arg2, %c0_i32, %c0_i32_0 : i32, i32, i32
  }
  func.func @transform_6(%arg0: i32, %arg1: i32, %arg2: i32) -> (i32, i32, i32) {
    %c0_i32 = arith.constant 0 : i32
    %c0_i32_0 = arith.constant 0 : i32
    %c0_i32_1 = arith.constant 0 : i32
    return %arg2, %c0_i32, %c0_i32_0 : i32, i32, i32
  }
  func.func @transform_7(%arg0: i32, %arg1: i32, %arg2: i32) -> (i32, i32) {
    %c0_i32 = arith.constant 0 : i32
    %c0_i32_0 = arith.constant 0 : i32
    %c0_i32_1 = arith.constant 0 : i32
    return %c0_i32, %c0_i32_0 : i32, i32
  }
  func.func @transform_8(%arg0: i32, %arg1: i32, %arg2: i32) -> (i32, i32, i32) {
    %c0_i32 = arith.constant 0 : i32
    %c0_i32_0 = arith.constant 0 : i32
    return %arg0, %arg1, %c0_i32 : i32, i32, i32
  }
}

</mosaic_0001>

<llo_original>
// kernel: tpu_custom_call.1
$region0: #{tpu_custom_call.1}
  #allocation0 [shape = 'u32[]', space=smem, size = 0x4, offset = 0x4, fixed_abs, tag = 'smem constant byte address 0x4 - core index']
  #allocation1 [shape = 'u32[144,128]{1,0:T(1,128)}', space=vmem, size = 0x12000, scoped, tag = 'internal scratch']
  %s0 = inlined_call_operand.hbm [shape: f32[2,8,32], index: 0, kind: input, shape index: {}]
  %s1 = inlined_call_operand.hbm [shape: f32[2,8,32], index: 1, kind: input, shape index: {}]
  %s2 = inlined_call_operand.vmem [shape: f32[2,32,64], index: 2, kind: input, shape index: {}]
  %s3 = inlined_call_operand.vmem [shape: f32[2,1,64], index: 3, kind: input, shape index: {}]
  %s4 = inlined_call_operand.vmem [shape: f32[2,32,16], index: 4, kind: input, shape index: {}]
  %s5 = inlined_call_operand.vmem [shape: f32[2,1,16], index: 5, kind: input, shape index: {}]
  %s6 = inlined_call_operand.vmem [shape: f32[2,16,32], index: 6, kind: input, shape index: {}]
  %s7 = inlined_call_operand.vmem [shape: f32[1,32], index: 7, kind: input, shape index: {}]
  %s8 = inlined_call_operand.hbm [shape: f32[2,8,32], index: 8, kind: output, shape index: {}]
  %s9 = sld [smem:[#allocation0]]
  $region77: #{tpu_custom_call.1} parent=0
    _
  %s11 = ssub.s32 1, %s9
  %s12 = scalar_select 0, %s11, %s9
  $region1: #{tpu_custom_call.1} parent=0
    #allocation2 [shape = 'u8[8192]{0}', space=vmem, size = 0x2000, scoped, tag = 'input window, operand 0']
    #allocation3 [shape = 's32[2]{0}', space=sflag, size = 0x8, scoped, tag = 'scoped memory for tpu_custom_call.1']
    #allocation4 [shape = 's32[2]{0}', space=sflag, size = 0x8, scoped, tag = 'scoped memory for tpu_custom_call.1']
    #allocation5 [shape = 'u8[8192]{0}', space=vmem, size = 0x2000, scoped, tag = 'input window, operand 1']
    #allocation6 [shape = 's32[2]{0}', space=sflag, size = 0x8, scoped, tag = 'scoped memory for tpu_custom_call.1']
    #allocation7 [shape = 'u8[8192]{0}', space=vmem, size = 0x2000, scoped, tag = 'output window, operand 0']
    %13 = vsyncpa [#allocation3], 0
    %s14 = scalar_lea.sflag [#allocation3], 1
    %15 = vsyncpa %s14, 0
    %16 = vsyncpa [#allocation6], 0
    %s17 = scalar_lea.sflag [#allocation6], 1
    %18 = vsyncpa %s17, 0
    %19 = vsyncpa [#allocation4], 0
    %s20 = scalar_lea.sflag [#allocation4], 1
    %21 = vsyncpa %s20, 0
    loop: start=0, step=1, limit=6
    $region2: #{tpu_custom_call.1} parent=1 // loop_pre_header
      _
    $region3: #{tpu_custom_call.1} parent=1 // loop_header
      %s23 = sphi 0, %s27
      %p24 = scmp.ge.s32.totalorder %s23, 6
      %s30 = sphi 0, %s49
      %s31 = sphi 0, %s45
      %s32 = sphi 0, %s41
      %s33 = sphi 0, %s30
      %s34 = sphi 0, %s31
      %s35 = sphi 0, %s32
      %s36 = sphi 0, %s33
      %s37 = sphi 0, %s34
      %s38 = sphi 0, %s35
      %s52 = sphi 0, %s54
      %s55 = sphi 0, %s52
      %s56 = sphi 0, %s55
      %s72 = sphi 0, %s56
      %s80 = sphi 0, %s82
      %s83 = sphi 0, %s80
      %s84 = sphi 0, %s83
      %s100 = sphi 0, %s84
      %s106 = sphi 0, %s108
      %s109 = sphi 0, %s106
      %s110 = sphi 0, %s109
      %s126 = sphi 0, %s110
      %s132 = sphi 0, %s134
      %s135 = sphi 0, %s132
      %s136 = sphi 0, %s135
      %s152 = sphi 0, %s136
      %s158 = sphi 0, %s160
      %s161 = sphi 0, %s158
      %s162 = sphi 0, %s161
      %s178 = sphi 0, %s162
      %s184 = sphi 0, %s186
      %s187 = sphi 0, %s184
      %s188 = sphi 0, %s187
      %s204 = sphi 0, %s188
      %s210 = sphi 0, %s212
      %s213 = sphi 0, %s210
      %s214 = sphi 0, %s213
      %s230 = sphi 0, %s214
      %s234 = sphi 0, %s234
      %s236 = sphi 0, %s234
      %s237 = sphi 0, %s236
      %s251 = sphi 0, %s237
      %s259 = sphi 0, %s261
      %s262 = sphi 0, %s259
      %s263 = sphi 0, %s262
      %s279 = sphi 0, %s263
    $region4: #{tpu_custom_call.1} parent=1 // loop_header_branch
      %26 = sbr.rel (%p24) target = $region8
    $region5: #{tpu_custom_call.1} parent=1 // loop_body
      %s28 = ssub.s32 %s23, 1
      %s29 = ssub.s32 %s23, 2
      %s39 = sadd.s32 1, %s32
      %p40 = scmp.ge.s32.totalorder %s39, 2
      %s41 = scalar_select %p40, 0, %s39
      %s42 = sadd.s32 1, %s31
      %s43 = scalar_select %p40, %s42, %s31
      %p44 = scmp.ge.s32.totalorder %s43, 1
      %s45 = scalar_select %p44, 0, %s43
      %s46 = sadd.s32 1, %s30
      %s47 = scalar_select %p44, %s46, %s30
      %p48 = scmp.ge.s32.totalorder %s47, 2
      %s49 = scalar_select %p48, 0, %s47
      %s50 = ssub.s32 %s30, %s49
      %p51 = scmp.eq.s32.totalorder %s50, 0
      %s53 = sadd.s32 %s52, 1
      %s54 = scalar_select %p51, %s52, %s53
      %p57 = pneg %p51
      %p58 = scmp.eq.s32.totalorder %s23, 3
      %p59 = por %p57, %p58
      %p60 = scmp.ne.s32.totalorder %s52, %s55
      %p61 = scmp.eq.s32.totalorder %s23, 0
      %p62 = por %p60, %p61
      %p63 = scmp.ne.s32.totalorder %s52, %s55
      %p64 = scmp.eq.s32.totalorder %s28, 3
      %p65 = por %p63, %p64
      %p66 = scmp.ne.s32.totalorder %s55, %s56
      %p67 = scmp.eq.s32.totalorder %s28, 0
      %p68 = por %p66, %p67
      %p69 = scmp.ne.s32.totalorder %s55, %s56
      %p70 = scmp.eq.s32.totalorder %s29, 3
      %p71 = por %p69, %p70
      %p73 = scmp.ne.s32.totalorder %s56, %s72
      %p74 = scmp.eq.s32.totalorder %s29, 0
      %p75 = por %p73, %p74
      %s76 = ssub.s32 %s30, %s49
      %s77 = ssub.s32 %s31, %s45
      %s78 = sor.u32 %s76, %s77
      %p79 = scmp.eq.s32.totalorder %s78, 0
      %s81 = sadd.s32 %s80, 1
      %s82 = scalar_select %p79, %s80, %s81
      %p85 = pneg %p79
      %p86 = scmp.eq.s32.totalorder %s23, 3
      %p87 = por %p85, %p86
      %p88 = scmp.ne.s32.totalorder %s80, %s83
      %p89 = scmp.eq.s32.totalorder %s23, 0
      %p90 = por %p88, %p89
      %p91 = scmp.ne.s32.totalorder %s80, %s83
      %p92 = scmp.eq.s32.totalorder %s28, 3
      %p93 = por %p91, %p92
      %p94 = scmp.ne.s32.totalorder %s83, %s84
      %p95 = scmp.eq.s32.totalorder %s28, 0
      %p96 = por %p94, %p95
      %p97 = scmp.ne.s32.totalorder %s83, %s84
      %p98 = scmp.eq.s32.totalorder %s29, 3
      %p99 = por %p97, %p98
      %p101 = scmp.ne.s32.totalorder %s84, %s100
      %p102 = scmp.eq.s32.totalorder %s29, 0
      %p103 = por %p101, %p102
      %s104 = ssub.s32 %s32, %s41
      %p105 = scmp.eq.s32.totalorder %s104, 0
      %s107 = sadd.s32 %s106, 1
      %s108 = scalar_select %p105, %s106, %s107
      %p111 = pneg %p105
      %p112 = scmp.eq.s32.totalorder %s23, 3
      %p113 = por %p111, %p112
      %p114 = scmp.ne.s32.totalorder %s106, %s109
      %p115 = scmp.eq.s32.totalorder %s23, 0
      %p116 = por %p114, %p115
      %p117 = scmp.ne.s32.totalorder %s106, %s109
      %p118 = scmp.eq.s32.totalorder %s28, 3
      %p119 = por %p117, %p118
      %p120 = scmp.ne.s32.totalorder %s109, %s110
      %p121 = scmp.eq.s32.totalorder %s28, 0
      %p122 = por %p120, %p121
      %p123 = scmp.ne.s32.totalorder %s109, %s110
      %p124 = scmp.eq.s32.totalorder %s29, 3
      %p125 = por %p123, %p124
      %p127 = scmp.ne.s32.totalorder %s110, %s126
      %p128 = scmp.eq.s32.totalorder %s29, 0
      %p129 = por %p127, %p128
      %s130 = ssub.s32 %s32, %s41
      %p131 = scmp.eq.s32.totalorder %s130, 0
      %s133 = sadd.s32 %s132, 1
      %s134 = scalar_select %p131, %s132, %s133
      %p137 = pneg %p131
      %p138 = scmp.eq.s32.totalorder %s23, 3
      %p139 = por %p137, %p138
      %p140 = scmp.ne.s32.totalorder %s132, %s135
      %p141 = scmp.eq.s32.totalorder %s23, 0
      %p142 = por %p140, %p141
      %p143 = scmp.ne.s32.totalorder %s132, %s135
      %p144 = scmp.eq.s32.totalorder %s28, 3
      %p145 = por %p143, %p144
      %p146 = scmp.ne.s32.totalorder %s135, %s136
      %p147 = scmp.eq.s32.totalorder %s28, 0
      %p148 = por %p146, %p147
      %p149 = scmp.ne.s32.totalorder %s135, %s136
      %p150 = scmp.eq.s32.totalorder %s29, 3
      %p151 = por %p149, %p150
      %p153 = scmp.ne.s32.totalorder %s136, %s152
      %p154 = scmp.eq.s32.totalorder %s29, 0
      %p155 = por %p153, %p154
      %s156 = ssub.s32 %s32, %s41
      %p157 = scmp.eq.s32.totalorder %s156, 0
      %s159 = sadd.s32 %s158, 1
      %s160 = scalar_select %p157, %s158, %s159
      %p163 = pneg %p157
      %p164 = scmp.eq.s32.totalorder %s23, 3
      %p165 = por %p163, %p164
      %p166 = scmp.ne.s32.totalorder %s158, %s161
      %p167 = scmp.eq.s32.totalorder %s23, 0
      %p168 = por %p166, %p167
      %p169 = scmp.ne.s32.totalorder %s158, %s161
      %p170 = scmp.eq.s32.totalorder %s28, 3
      %p171 = por %p169, %p170
      %p172 = scmp.ne.s32.totalorder %s161, %s162
      %p173 = scmp.eq.s32.totalorder %s28, 0
      %p174 = por %p172, %p173
      %p175 = scmp.ne.s32.totalorder %s161, %s162
      %p176 = scmp.eq.s32.totalorder %s29, 3
      %p177 = por %p175, %p176
      %p179 = scmp.ne.s32.totalorder %s162, %s178
      %p180 = scmp.eq.s32.totalorder %s29, 0
      %p181 = por %p179, %p180
      %s182 = ssub.s32 %s32, %s41
      %p183 = scmp.eq.s32.totalorder %s182, 0
      %s185 = sadd.s32 %s184, 1
      %s186 = scalar_select %p183, %s184, %s185
      %p189 = pneg %p183
      %p190 = scmp.eq.s32.totalorder %s23, 3
      %p191 = por %p189, %p190
      %p192 = scmp.ne.s32.totalorder %s184, %s187
      %p193 = scmp.eq.s32.totalorder %s23, 0
      %p194 = por %p192, %p193
      %p195 = scmp.ne.s32.totalorder %s184, %s187
      %p196 = scmp.eq.s32.totalorder %s28, 3
      %p197 = por %p195, %p196
      %p198 = scmp.ne.s32.totalorder %s187, %s188
      %p199 = scmp.eq.s32.totalorder %s28, 0
      %p200 = por %p198, %p199
      %p201 = scmp.ne.s32.totalorder %s187, %s188
      %p202 = scmp.eq.s32.totalorder %s29, 3
      %p203 = por %p201, %p202
      %p205 = scmp.ne.s32.totalorder %s188, %s204
      %p206 = scmp.eq.s32.totalorder %s29, 0
      %p207 = por %p205, %p206
      %s208 = ssub.s32 %s32, %s41
      %p209 = scmp.eq.s32.totalorder %s208, 0
      %s211 = sadd.s32 %s210, 1
      %s212 = scalar_select %p209, %s210, %s211
      %p215 = pneg %p209
      %p216 = scmp.eq.s32.totalorder %s23, 3
      %p217 = por %p215, %p216
      %p218 = scmp.ne.s32.totalorder %s210, %s213
      %p219 = scmp.eq.s32.totalorder %s23, 0
      %p220 = por %p218, %p219
      %p221 = scmp.ne.s32.totalorder %s210, %s213
      %p222 = scmp.eq.s32.totalorder %s28, 3
      %p223 = por %p221, %p222
      %p224 = scmp.ne.s32.totalorder %s213, %s214
      %p225 = scmp.eq.s32.totalorder %s28, 0
      %p226 = por %p224, %p225
      %p227 = scmp.ne.s32.totalorder %s213, %s214
      %p228 = scmp.eq.s32.totalorder %s29, 3
      %p229 = por %p227, %p228
      %p231 = scmp.ne.s32.totalorder %s214, %s230
      %p232 = scmp.eq.s32.totalorder %s29, 0
      %p233 = por %p231, %p232
      %s235 = sadd.s32 %s234, 1
      %p238 = scmp.eq.s32.totalorder %s23, 3
      %p239 = scmp.ne.s32.totalorder %s234, %s236
      %p240 = scmp.eq.s32.totalorder %s23, 0
      %p241 = por %p239, %p240
      %p242 = scmp.ne.s32.totalorder %s234, %s236
      %p243 = scmp.eq.s32.totalorder %s28, 3
      %p244 = por %p242, %p243
      %p245 = scmp.ne.s32.totalorder %s236, %s237
      %p246 = scmp.eq.s32.totalorder %s28, 0
      %p247 = por %p245, %p246
      %p248 = scmp.ne.s32.totalorder %s236, %s237
      %p249 = scmp.eq.s32.totalorder %s29, 3
      %p250 = por %p248, %p249
      %p252 = scmp.ne.s32.totalorder %s237, %s251
      %p253 = scmp.eq.s32.totalorder %s29, 0
      %p254 = por %p252, %p253
      %s255 = ssub.s32 %s30, %s49
      %s256 = ssub.s32 %s31, %s45
      %s257 = sor.u32 %s255, %s256
      %p258 = scmp.eq.s32.totalorder %s257, 0
      %s260 = sadd.s32 %s259, 1
      %s261 = scalar_select %p258, %s259, %s260
      %p264 = pneg %p258
      %p265 = scmp.eq.s32.totalorder %s23, 3
      %p266 = por %p264, %p265
      %p267 = scmp.ne.s32.totalorder %s259, %s262
      %p268 = scmp.eq.s32.totalorder %s23, 0
      %p269 = por %p267, %p268
      %p270 = scmp.ne.s32.totalorder %s259, %s262
      %p271 = scmp.eq.s32.totalorder %s28, 3
      %p272 = por %p270, %p271
      %p273 = scmp.ne.s32.totalorder %s262, %s263
      %p274 = scmp.eq.s32.totalorder %s28, 0
      %p275 = por %p273, %p274
      %p276 = scmp.ne.s32.totalorder %s262, %s263
      %p277 = scmp.eq.s32.totalorder %s29, 3
      %p278 = por %p276, %p277
      %p280 = scmp.ne.s32.totalorder %s263, %s279
      %p281 = scmp.eq.s32.totalorder %s29, 0
      %p282 = por %p280, %p281
      %p283 = scmp.le.s32.totalorder 1, %s23
      %p284 = scmp.lt.s32.totalorder %s23, 5
      %p285 = pnand %p283, %p284
      %p286 = pneg %p285
      // Predicated region
      $region9: #{tpu_custom_call.1} parent=5 // pred_check
        _
      $region10: #{tpu_custom_call.1} parent=5 // pred_check_branch
        %288 = sbr.rel (%p285) target = $region12
      $region11: #{tpu_custom_call.1} parent=5 // pred_region
        %s289 = ssub.s32 %s23, 1
        // Predicated region
        $region13: #{tpu_custom_call.1} parent=11 // pred_check
          %p290 = pneg %p247
        $region14: #{tpu_custom_call.1} parent=11 // pred_check_branch
          %292 = sbr.rel (%p290) target = $region16
        $region15: #{tpu_custom_call.1} parent=11 // pred_region
          _
        $region16: #{tpu_custom_call.1} parent=11 // pred_fallthru
          _
      $region12: #{tpu_custom_call.1} parent=5 // pred_fallthru
        _
      %p293 = scmp.lt.s32.totalorder %s23, 4
      // Predicated region
      $region17: #{tpu_custom_call.1} parent=5 // pred_check
        %p294 = pneg %p293
      $region18: #{tpu_custom_call.1} parent=5 // pred_check_branch
        %296 = sbr.rel (%p294) target = $region20
      $region19: #{tpu_custom_call.1} parent=5 // pred_region
        // Predicated region
        $region21: #{tpu_custom_call.1} parent=19 // pred_check
          %p297 = pneg %p62
        $region22: #{tpu_custom_call.1} parent=19 // pred_check_branch
          %299 = sbr.rel (%p297) target = $region24
        $region23: #{tpu_custom_call.1} parent=19 // pred_region
          %s300 = sand.u32 %s52, 1
          %s301 = scalar_lea.sflag [#allocation3], %s300
          %s302 = sand.u32 %s52, 1
          %s303 = smul.addr %s302, 8
          %s304 = scalar_lea.vmem [#allocation2], %s303
          %s306 = ssub.s32 128, 128
          %307 = vsyncadd %s301, %s306
          %s308 = smul.addr %s30, 128
          %s309 = scalar_lea.hbm %s0, %s308
          %s311 = sshll.u32 %s304, 4
          %s312 = int_to_ptr.vmem [resolvable:$true] %s311
          %314 = dma.hbm_to_vmem [thread:$0]  %s309, 128, %s312, %s301
        $region24: #{tpu_custom_call.1} parent=19 // pred_fallthru
          _
        // Predicated region
        $region25: #{tpu_custom_call.1} parent=19 // pred_check
          %p315 = pneg %p90
        $region26: #{tpu_custom_call.1} parent=19 // pred_check_branch
          %317 = sbr.rel (%p315) target = $region28
        $region27: #{tpu_custom_call.1} parent=19 // pred_region
          %s318 = sand.u32 %s80, 1
          %s319 = scalar_lea.sflag [#allocation6], %s318
          %s320 = sand.u32 %s80, 1
          %s321 = smul.addr %s320, 8
          %s322 = scalar_lea.vmem [#allocation5], %s321
          %s324 = ssub.s32 128, 128
          %325 = vsyncadd %s319, %s324
          %s326 = sadd.s32 %s31, %s30
          %s327 = smul.addr %s326, 128
          %s328 = scalar_lea.hbm %s1, %s327
          %s330 = sshll.u32 %s322, 4
          %s331 = int_to_ptr.vmem [resolvable:$true] %s330
          %333 = dma.hbm_to_vmem [thread:$0]  %s328, 128, %s331, %s319
        $region28: #{tpu_custom_call.1} parent=19 // pred_fallthru
          _
        // Predicated region
        $region29: #{tpu_custom_call.1} parent=19 // pred_check
          %p334 = pneg %p116
        $region30: #{tpu_custom_call.1} parent=19 // pred_check_branch
          %336 = sbr.rel (%p334) target = $region32
        $region31: #{tpu_custom_call.1} parent=19 // pred_region
          %p337 = scmp.lt.s32.totalorder %s32, 1
          %s338 = scalar_select %p337, %s32, 1
          %s339 = smul.addr %s338, 4
          %s340 = smul.addr %s339, 8
          %s341 = scalar_lea.vmem %s2, %s340
        $region32: #{tpu_custom_call.1} parent=19 // pred_fallthru
          _
        // Predicated region
        $region33: #{tpu_custom_call.1} parent=19 // pred_check
          %p342 = pneg %p142
        $region34: #{tpu_custom_call.1} parent=19 // pred_check_branch
          %344 = sbr.rel (%p342) target = $region36
        $region35: #{tpu_custom_call.1} parent=19 // pred_region
          %p345 = scmp.lt.s32.totalorder %s32, 1
          %s346 = scalar_select %p345, %s32, 1
          %s347 = scalar_lea.vmem %s3, %s346
        $region36: #{tpu_custom_call.1} parent=19 // pred_fallthru
          _
        // Predicated region
        $region37: #{tpu_custom_call.1} parent=19 // pred_check
          %p348 = pneg %p168
        $region38: #{tpu_custom_call.1} parent=19 // pred_check_branch
          %350 = sbr.rel (%p348) target = $region40
        $region39: #{tpu_custom_call.1} parent=19 // pred_region
          %p351 = scmp.lt.s32.totalorder %s32, 1
          %s352 = scalar_select %p351, %s32, 1
          %s353 = smul.addr %s352, 4
          %s354 = smul.addr %s353, 8
          %s355 = scalar_lea.vmem %s4, %s354
        $region40: #{tpu_custom_call.1} parent=19 // pred_fallthru
          _
        // Predicated region
        $region41: #{tpu_custom_call.1} parent=19 // pred_check
          %p356 = pneg %p194
        $region42: #{tpu_custom_call.1} parent=19 // pred_check_branch
          %358 = sbr.rel (%p356) target = $region44
        $region43: #{tpu_custom_call.1} parent=19 // pred_region
          %p359 = scmp.lt.s32.totalorder %s32, 1
          %s360 = scalar_select %p359, %s32, 1
          %s361 = scalar_lea.vmem %s5, %s360
        $region44: #{tpu_custom_call.1} parent=19 // pred_fallthru
          _
        // Predicated region
        $region45: #{tpu_custom_call.1} parent=19 // pred_check
          %p362 = pneg %p220
        $region46: #{tpu_custom_call.1} parent=19 // pred_check_branch
          %364 = sbr.rel (%p362) target = $region48
        $region47: #{tpu_custom_call.1} parent=19 // pred_region
          %p365 = scmp.lt.s32.totalorder %s32, 1
          %s366 = scalar_select %p365, %s32, 1
          %s367 = smul.addr %s366, 2
          %s368 = smul.addr %s367, 8
          %s369 = scalar_lea.vmem %s6, %s368
        $region48: #{tpu_custom_call.1} parent=19 // pred_fallthru
          _
      $region20: #{tpu_custom_call.1} parent=5 // pred_fallthru
        _
      %p370 = scmp.le.s32.totalorder 1, %s23
      %p371 = scmp.lt.s32.totalorder %s23, 5
      %p372 = pnand %p370, %p371
      %p373 = pneg %p372
      // Predicated region
      $region49: #{tpu_custom_call.1} parent=5 // pred_check
        _
      $region50: #{tpu_custom_call.1} parent=5 // pred_check_branch
        %375 = sbr.rel (%p372) target = $region52
      $region51: #{tpu_custom_call.1} parent=5 // pred_region
        %s376 = ssub.s32 %s23, 1
        %s377 = sand.u32 %s55, 1
        %s378 = scalar_lea.sflag [#allocation3], %s377
        %s379 = sand.u32 %s55, 1
        %s380 = smul.addr %s379, 8
        %s381 = scalar_lea.vmem [#allocation2], %s380
        // Predicated region
        $region53: #{tpu_custom_call.1} parent=51 // pred_check
          %p382 = pneg %p68
        $region54: #{tpu_custom_call.1} parent=51 // pred_check_branch
          %384 = sbr.rel (%p382) target = $region56
        $region55: #{tpu_custom_call.1} parent=51 // pred_region
          %385 = dma.done %s378, 128
        $region56: #{tpu_custom_call.1} parent=51 // pred_fallthru
          _
        %s386 = sand.u32 %s83, 1
        %s387 = scalar_lea.sflag [#allocation6], %s386
        %s388 = sand.u32 %s83, 1
        %s389 = smul.addr %s388, 8
        %s390 = scalar_lea.vmem [#allocation5], %s389
        // Predicated region
        $region57: #{tpu_custom_call.1} parent=51 // pred_check
          %p391 = pneg %p96
        $region58: #{tpu_custom_call.1} parent=51 // pred_check_branch
          %393 = sbr.rel (%p391) target = $region60
        $region59: #{tpu_custom_call.1} parent=51 // pred_region
          %394 = dma.done %s387, 128
        $region60: #{tpu_custom_call.1} parent=51 // pred_fallthru
          _
        %s395 = sand.u32 %s55, 1
        %s396 = scalar_lea.sflag [#allocation3], %s395
        %s397 = sand.u32 %s55, 1
        %s398 = smul.addr %s397, 8
        %s399 = scalar_lea.vmem [#allocation2], %s398
        %p400 = pneg %p68
        %p401 = pneg %p65
        %s402 = sand.u32 %s83, 1
        %s403 = scalar_lea.sflag [#allocation6], %s402
        %s404 = sand.u32 %s83, 1
        %s405 = smul.addr %s404, 8
        %s406 = scalar_lea.vmem [#allocation5], %s405
        %p407 = pneg %p96
        %p408 = pneg %p93
        %p409 = scmp.lt.s32.totalorder %s35, 1
        %s410 = scalar_select %p409, %s35, 1
        %s411 = smul.addr %s410, 4
        %s412 = smul.addr %s411, 8
        %s413 = scalar_lea.vmem %s2, %s412
        %p414 = pneg %p122
        %p415 = pneg %p119
        %p416 = scmp.lt.s32.totalorder %s35, 1
        %s417 = scalar_select %p416, %s35, 1
        %s418 = scalar_lea.vmem %s3, %s417
        %p419 = pneg %p148
        %p420 = pneg %p145
        %p421 = scmp.lt.s32.totalorder %s35, 1
        %s422 = scalar_select %p421, %s35, 1
        %s423 = smul.addr %s422, 4
        %s424 = smul.addr %s423, 8
        %s425 = scalar_lea.vmem %s4, %s424
        %p426 = pneg %p174
        %p427 = pneg %p171
        %p428 = scmp.lt.s32.totalorder %s35, 1
        %s429 = scalar_select %p428, %s35, 1
        %s430 = scalar_lea.vmem %s5, %s429
        %p431 = pneg %p200
        %p432 = pneg %p197
        %p433 = scmp.lt.s32.totalorder %s35, 1
        %s434 = scalar_select %p433, %s35, 1
        %s435 = smul.addr %s434, 2
        %s436 = smul.addr %s435, 8
        %s437 = scalar_lea.vmem %s6, %s436
        %p438 = pneg %p226
        %p439 = pneg %p223
        %p440 = pneg %p247
        %p441 = pneg %p244
        %p442 = pneg %p275
        %p443 = pneg %p272
        %s444 = sand.u32 %s262, 1
        %s445 = scalar_lea.sflag [#allocation4], %s444
        %s446 = sand.u32 %s262, 1
        %s447 = smul.addr %s446, 8
        %s448 = scalar_lea.vmem [#allocation7], %s447
        %p449 = scmp.lt.s32.totalorder %s35, 1
        %s450 = scalar_select %p449, %s35, 1
        %s451 = smul.addr %s450, 4
        %s452 = smul.addr %s451, 8
        %s453 = scalar_lea.vmem %s2, %s452
        %p454 = scmp.lt.s32.totalorder %s35, 1
        %s455 = scalar_select %p454, %s35, 1
        %s456 = scalar_lea.vmem %s3, %s455
        %p457 = scmp.lt.s32.totalorder %s35, 1
        %s458 = scalar_select %p457, %s35, 1
        %s459 = smul.addr %s458, 4
        %s460 = smul.addr %s459, 8
        %s461 = scalar_lea.vmem %s4, %s460
        %p462 = scmp.lt.s32.totalorder %s35, 1
        %s463 = scalar_select %p462, %s35, 1
        %s464 = scalar_lea.vmem %s5, %s463
        %p465 = scmp.lt.s32.totalorder %s35, 1
        %s466 = scalar_select %p465, %s35, 1
        %s467 = smul.addr %s466, 2
        %s468 = smul.addr %s467, 8
        %s469 = scalar_lea.vmem %s6, %s468
        %v471 = vld [vmem:[%s381] sm:$0xff]
        %v472 = vpack.c.bf16 %v471, %v471
        %v473 = vld [vmem:[%s390] sm:$0xff]
        %v474 = vpack.c.bf16 %v473, %v473
        %v475 = vld [vmem:[%s453] sm:$0xff]
        %v476 = vld [vmem:[%s453 + $0x8] sm:$0xff]
        %v477 = vld [vmem:[%s453 + $0x10] sm:$0xff]
        %v478 = vld [vmem:[%s453 + $0x18] sm:$0xff]
        %v479 = vpack.c.bf16 %v476, %v475
        %v480 = vpack.c.bf16 %v478, %v477
        %v481 = vld [vmem:[%s456] sm:$0x1]
        %v483 = vlaneseq
        %v484 = vshrl.u32 %v483, 7
        %v485 = vsub.s32 0, %v484
        %v486 = vrot.slane %v481, %v485
        %vm488 = vcmask 261120
        %v490 = vsel %vm488, %v472, 0
        %492 = vmatprep.subr.bf16.mxu0 0
        %493 = vmatpush1.bf16.msra.mxu0 %v479
        %494 = vmatprep.subr.bf16.mxu0 0
        %495 = vmatpush1.bf16.msra.mxu0 %v480
        %496 = vmatprep.subr.bf16.mxu0 0
        %497 = vmatpush1.bf16.msra.mxu0 0
        %498 = vmatprep.subr.bf16.mxu0 0
        %499 = vmatpush1.bf16.msra.mxu0 0
        %500 = vmatprep.subr.bf16.mxu0 0
        %501 = vmatpush1.bf16.msra.mxu0 0
        %502 = vmatprep.subr.bf16.mxu0 0
        %503 = vmatpush1.bf16.msra.mxu0 0
        %504 = vmatprep.subr.bf16.mxu0 0
        %505 = vmatpush1.bf16.msra.mxu0 0
        %506 = vmatprep.subr.bf16.mxu0 0
        %507 = vmatpush1.bf16.msra.mxu0 0
        %508 = vmatprep.subr.bf16.mxu0 0
        %509 = vmatpush1.bf16.msra.mxu0 0
        %510 = vmatprep.subr.bf16.mxu0 0
        %511 = vmatpush1.bf16.msra.mxu0 0
        %512 = vmatprep.subr.bf16.mxu0 0
        %513 = vmatpush1.bf16.msra.mxu0 0
        %514 = vmatprep.subr.bf16.mxu0 0
        %515 = vmatpush1.bf16.msra.mxu0 0
        %516 = vmatprep.subr.bf16.mxu0 0
        %517 = vmatpush1.bf16.msra.mxu0 0
        %518 = vmatprep.subr.bf16.mxu0 0
        %519 = vmatpush1.bf16.msra.mxu0 0
        %520 = vmatprep.subr.bf16.mxu0 0
        %521 = vmatpush1.bf16.msra.mxu0 0
        %522 = vmatprep.subr.bf16.mxu0 0
        %523 = vmatpush1.bf16.msra.mxu0 0
        %524 = vmatprep.mubr.bf16.mxu0 0
        %525 = vmatmul.mubr.bf16.gmra.mrb[0].mxu0 %v490
        %v526 = vpop.f32.mrb[0].mxu0
        %v527 = vadd.f32 %v486, %v526
        %v528 = vpop.f32.mrb[0].mxu0
        %v529 = vpop.f32.mrb[0].mxu0
        %v530 = vpop.f32.mrb[0].mxu0
        %531 = vdwg.mxu0
        %v532 = vld [vmem:[%s461] sm:$0xff]
        %v533 = vld [vmem:[%s461 + $0x8] sm:$0xff]
        %v534 = vld [vmem:[%s461 + $0x10] sm:$0xff]
        %v535 = vld [vmem:[%s461 + $0x18] sm:$0xff]
        %v536 = vpack.c.bf16 %v533, %v532
        %v537 = vpack.c.bf16 %v535, %v534
        %v538 = vld [vmem:[%s464] sm:$0x1]
        %v540 = vlaneseq
        %v541 = vshrl.u32 %v540, 7
        %v542 = vsub.s32 0, %v541
        %v543 = vrot.slane %v538, %v542
        %v546 = vsel %vm488, %v474, 0
        %548 = vmatprep.subr.bf16.mxu0 0
        %549 = vmatpush1.bf16.msra.mxu0 %v536
        %550 = vmatprep.subr.bf16.mxu0 0
        %551 = vmatpush1.bf16.msra.mxu0 %v537
        %552 = vmatprep.subr.bf16.mxu0 0
        %553 = vmatpush1.bf16.msra.mxu0 0
        %554 = vmatprep.subr.bf16.mxu0 0
        %555 = vmatpush1.bf16.msra.mxu0 0
        %556 = vmatprep.subr.bf16.mxu0 0
        %557 = vmatpush1.bf16.msra.mxu0 0
        %558 = vmatprep.subr.bf16.mxu0 0
        %559 = vmatpush1.bf16.msra.mxu0 0
        %560 = vmatprep.subr.bf16.mxu0 0
        %561 = vmatpush1.bf16.msra.mxu0 0
        %562 = vmatprep.subr.bf16.mxu0 0
        %563 = vmatpush1.bf16.msra.mxu0 0
        %564 = vmatprep.subr.bf16.mxu0 0
        %565 = vmatpush1.bf16.msra.mxu0 0
        %566 = vmatprep.subr.bf16.mxu0 0
        %567 = vmatpush1.bf16.msra.mxu0 0
        %568 = vmatprep.subr.bf16.mxu0 0
        %569 = vmatpush1.bf16.msra.mxu0 0
        %570 = vmatprep.subr.bf16.mxu0 0
        %571 = vmatpush1.bf16.msra.mxu0 0
        %572 = vmatprep.subr.bf16.mxu0 0
        %573 = vmatpush1.bf16.msra.mxu0 0
        %574 = vmatprep.subr.bf16.mxu0 0
        %575 = vmatpush1.bf16.msra.mxu0 0
        %576 = vmatprep.subr.bf16.mxu0 0
        %577 = vmatpush1.bf16.msra.mxu0 0
        %578 = vmatprep.subr.bf16.mxu0 0
        %579 = vmatpush1.bf16.msra.mxu0 0
        %580 = vmatprep.mubr.bf16.mxu0 0
        %581 = vmatmul.mubr.bf16.gmra.mrb[0].mxu0 %v546
        %v582 = vpop.f32.mrb[0].mxu0
        %v583 = vadd.f32 %v543, %v582
        %v584 = vpop.f32.mrb[0].mxu0
        %v585 = vpop.f32.mrb[0].mxu0
        %v586 = vpop.f32.mrb[0].mxu0
        %587 = vdwg.mxu0
        %v588 = vpack.c.bf16 %v527, %v527
        %v589 = vmul.f32 %v583, 0.0625
        %v590 = vpack.c.bf16 %v589, %v589
        %v591 = vmul.f32 %v527, 0.0625
        %v592 = vpack.c.bf16 %v591, %v591
        %594 = vrot.lane.b32.xlu0 %v588, 112
        %v595 = vpop.permute.xlu0 %594
        %vm596 = vcmask 130048
        %v598 = vsel %vm596, %v592, 0
        %v601 = vsel %vm596, %v595, 0
        %603 = vmatprep.subr.bf16.mxu0 0
        %604 = vmatpush1.bf16.xpose.msra.mxu0 %v601
        %605 = vmatprep.subr.bf16.mxu0 0
        %606 = vmatpush1.bf16.xpose.msra.mxu0 0
        %607 = vmatprep.subr.bf16.mxu0 0
        %608 = vmatpush1.bf16.xpose.msra.mxu0 0
        %609 = vmatprep.subr.bf16.mxu0 0
        %610 = vmatpush1.bf16.xpose.msra.mxu0 0
        %611 = vmatprep.subr.bf16.mxu0 0
        %612 = vmatpush1.bf16.xpose.msra.mxu0 0
        %613 = vmatprep.subr.bf16.mxu0 0
        %614 = vmatpush1.bf16.xpose.msra.mxu0 0
        %615 = vmatprep.subr.bf16.mxu0 0
        %616 = vmatpush1.bf16.xpose.msra.mxu0 0
        %617 = vmatprep.subr.bf16.mxu0 0
        %618 = vmatpush1.bf16.xpose.msra.mxu0 0
        %619 = vmatprep.subr.bf16.mxu0 0
        %620 = vmatpush1.bf16.xpose.msra.mxu0 0
        %621 = vmatprep.subr.bf16.mxu0 0
        %622 = vmatpush1.bf16.xpose.msra.mxu0 0
        %623 = vmatprep.subr.bf16.mxu0 0
        %624 = vmatpush1.bf16.xpose.msra.mxu0 0
        %625 = vmatprep.subr.bf16.mxu0 0
        %626 = vmatpush1.bf16.xpose.msra.mxu0 0
        %627 = vmatprep.subr.bf16.mxu0 0
        %628 = vmatpush1.bf16.xpose.msra.mxu0 0
        %629 = vmatprep.subr.bf16.mxu0 0
        %630 = vmatpush1.bf16.xpose.msra.mxu0 0
        %631 = vmatprep.subr.bf16.mxu0 0
        %632 = vmatpush1.bf16.xpose.msra.mxu0 0
        %633 = vmatprep.subr.bf16.mxu0 0
        %634 = vmatpush1.bf16.xpose.msra.mxu0 0
        %635 = vmatprep.mubr.bf16.mxu0 0
        %636 = vmatmul.mubr.bf16.gmra.mrb[0].mxu0 %v598
        %v637 = vpop.f32.mrb[0].mxu0
        %v638 = vadd.f32 0.0, %v637
        %v639 = vpop.f32.mrb[0].mxu0
        %v640 = vpop.f32.mrb[0].mxu0
        %v641 = vpop.f32.mrb[0].mxu0
        %642 = vdwg.mxu0
        %s643 = smul.u32 %s34, 8
        %v644 = vlaneseq
        %v645 = vshrl.u32 %v644, 7
        %v646 = vstv %s643
        %v647 = vadd.s32 %v646, %v645
        %v648 = vlaneseq
        %v649 = vand.u32 %v648, 127
        %vm650 = vcmp.gt.s32.totalorder %v649, %v647
        %v651 = vsel %vm650, -62500.0, 0.0
        %v653 = vsel %vm596, %v590, 0
        %655 = vmatprep.subr.bf16.mxu0 0
        %656 = vmatpush1.bf16.xpose.msra.mxu0 %v601
        %657 = vmatprep.subr.bf16.mxu0 0
        %658 = vmatpush1.bf16.xpose.msra.mxu0 0
        %659 = vmatprep.subr.bf16.mxu0 0
        %660 = vmatpush1.bf16.xpose.msra.mxu0 0
        %661 = vmatprep.subr.bf16.mxu0 0
        %662 = vmatpush1.bf16.xpose.msra.mxu0 0
        %663 = vmatprep.subr.bf16.mxu0 0
        %664 = vmatpush1.bf16.xpose.msra.mxu0 0
        %665 = vmatprep.subr.bf16.mxu0 0
        %666 = vmatpush1.bf16.xpose.msra.mxu0 0
        %667 = vmatprep.subr.bf16.mxu0 0
        %668 = vmatpush1.bf16.xpose.msra.mxu0 0
        %669 = vmatprep.subr.bf16.mxu0 0
        %670 = vmatpush1.bf16.xpose.msra.mxu0 0
        %671 = vmatprep.subr.bf16.mxu0 0
        %672 = vmatpush1.bf16.xpose.msra.mxu0 0
        %673 = vmatprep.subr.bf16.mxu0 0
        %674 = vmatpush1.bf16.xpose.msra.mxu0 0
        %675 = vmatprep.subr.bf16.mxu0 0
        %676 = vmatpush1.bf16.xpose.msra.mxu0 0
        %677 = vmatprep.subr.bf16.mxu0 0
        %678 = vmatpush1.bf16.xpose.msra.mxu0 0
        %679 = vmatprep.subr.bf16.mxu0 0
        %680 = vmatpush1.bf16.xpose.msra.mxu0 0
        %681 = vmatprep.subr.bf16.mxu0 0
        %682 = vmatpush1.bf16.xpose.msra.mxu0 0
        %683 = vmatprep.subr.bf16.mxu0 0
        %684 = vmatpush1.bf16.xpose.msra.mxu0 0
        %685 = vmatprep.subr.bf16.mxu0 0
        %686 = vmatpush1.bf16.xpose.msra.mxu0 0
        %687 = vmatprep.mubr.bf16.mxu0 0
        %688 = vmatmul.mubr.bf16.gmra.mrb[0].mxu0 %v653
        %v689 = vpop.f32.mrb[0].mxu0
        %v690 = vadd.f32 %v651, %v689
        %v691 = vpop.f32.mrb[0].mxu0
        %v692 = vpop.f32.mrb[0].mxu0
        %v693 = vpop.f32.mrb[0].mxu0
        %694 = vdwg.mxu0
        %v696 = vcombine.high %v690, %v690
        %v698 = vunpack.c.l.s4 1966171168
        %v699 = vunpack.c.0.s8 %v698
        %v700 = vlaneseq
        %v701 = vshrl.u32 %v700, 7
        %v702 = vsub.s32 %v699, %v701
        %v703 = vrot.slane %v690, %v702
        %v705 = vunpack.c.l.s4 1966171168
        %v706 = vunpack.c.0.s8 %v705
        %v707 = vlaneseq
        %v708 = vshrl.u32 %v707, 7
        %v709 = vsub.s32 %v706, %v708
        %v710 = vrot.slane %v696, %v709
        %v711 = vcombine.high %v703, %v703
        %v712 = vcombine.high %v710, %v710
        %v714 = vunpack.c.l.s4 1966171168
        %v715 = vunpack.c.0.s8 %v714
        %v716 = vlaneseq
        %v717 = vshrl.u32 %v716, 7
        %v718 = vsub.s32 %v715, %v717
        %v719 = vrot.slane %v703, %v718
        %v721 = vunpack.c.l.s4 1966171168
        %v722 = vunpack.c.0.s8 %v721
        %v723 = vlaneseq
        %v724 = vshrl.u32 %v723, 7
        %v725 = vsub.s32 %v722, %v724
        %v726 = vrot.slane %v710, %v725
        %v728 = vunpack.c.l.s4 1966171168
        %v729 = vunpack.c.0.s8 %v728
        %v730 = vlaneseq
        %v731 = vshrl.u32 %v730, 7
        %v732 = vsub.s32 %v729, %v731
        %v733 = vrot.slane %v711, %v732
        %v735 = vunpack.c.l.s4 1966171168
        %v736 = vunpack.c.0.s8 %v735
        %v737 = vlaneseq
        %v738 = vshrl.u32 %v737, 7
        %v739 = vsub.s32 %v736, %v738
        %v740 = vrot.slane %v712, %v739
        %v741 = vcombine.high %v719, %v719
        %v742 = vcombine.high %v726, %v726
        %v743 = vcombine.high %v733, %v733
        %v744 = vcombine.high %v740, %v740
        %v745 = vlaneseq
        %v746 = vshrl.u32 %v745, 7
        %v747 = vsub.s32 0, %v746
        %v748 = vrot.slane %v719, %v747
        %v749 = vlaneseq
        %v750 = vshrl.u32 %v749, 7
        %v751 = vsub.s32 0, %v750
        %v752 = vrot.slane %v733, %v751
        %v753 = vlaneseq
        %v754 = vshrl.u32 %v753, 7
        %v755 = vsub.s32 0, %v754
        %v756 = vrot.slane %v741, %v755
        %v757 = vlaneseq
        %v758 = vshrl.u32 %v757, 7
        %v759 = vsub.s32 0, %v758
        %v760 = vrot.slane %v743, %v759
        %v761 = vlaneseq
        %v762 = vshrl.u32 %v761, 7
        %v763 = vsub.s32 0, %v762
        %v764 = vrot.slane %v726, %v763
        %v765 = vlaneseq
        %v766 = vshrl.u32 %v765, 7
        %v767 = vsub.s32 0, %v766
        %v768 = vrot.slane %v740, %v767
        %v769 = vlaneseq
        %v770 = vshrl.u32 %v769, 7
        %v771 = vsub.s32 0, %v770
        %v772 = vrot.slane %v742, %v771
        %v773 = vlaneseq
        %v774 = vshrl.u32 %v773, 7
        %v775 = vsub.s32 0, %v774
        %v776 = vrot.slane %v744, %v775
        %v785 = vadd.f32 %v638, %v748
        %v786 = vadd.f32 %v638, %v752
        %v787 = vadd.f32 %v638, %v756
        %v788 = vadd.f32 %v638, %v760
        %v789 = vadd.f32 %v638, %v764
        %v790 = vadd.f32 %v638, %v768
        %v791 = vadd.f32 %v638, %v772
        %v792 = vadd.f32 %v638, %v776
        %v793 = vlaneseq
        %v794 = vshrl.u32 %v793, 7
        %v795 = vsub.s32 0, %v794
        %v796 = vrot.slane %v651, %v795
        %798 = vbcast.lane.b32.xlu0 %v796, 256
        %v799 = vpop.permute.xlu0 %798
        %v800 = vlaneseq
        %v801 = vshrl.u32 %v800, 7
        %v802 = vsub.s32 1, %v801
        %v803 = vrot.slane %v651, %v802
        %805 = vbcast.lane.b32.xlu0 %v803, 256
        %v806 = vpop.permute.xlu0 %805
        %v807 = vlaneseq
        %v808 = vshrl.u32 %v807, 7
        %v809 = vsub.s32 2, %v808
        %v810 = vrot.slane %v651, %v809
        %812 = vbcast.lane.b32.xlu0 %v810, 256
        %v813 = vpop.permute.xlu0 %812
        %v814 = vlaneseq
        %v815 = vshrl.u32 %v814, 7
        %v816 = vsub.s32 3, %v815
        %v817 = vrot.slane %v651, %v816
        %819 = vbcast.lane.b32.xlu0 %v817, 256
        %v820 = vpop.permute.xlu0 %819
        %v821 = vlaneseq
        %v822 = vshrl.u32 %v821, 7
        %v823 = vsub.s32 4, %v822
        %v824 = vrot.slane %v651, %v823
        %826 = vbcast.lane.b32.xlu0 %v824, 256
        %v827 = vpop.permute.xlu0 %826
        %v828 = vlaneseq
        %v829 = vshrl.u32 %v828, 7
        %v830 = vsub.s32 5, %v829
        %v831 = vrot.slane %v651, %v830
        %833 = vbcast.lane.b32.xlu0 %v831, 256
        %v834 = vpop.permute.xlu0 %833
        %v835 = vlaneseq
        %v836 = vshrl.u32 %v835, 7
        %v837 = vsub.s32 6, %v836
        %v838 = vrot.slane %v651, %v837
        %840 = vbcast.lane.b32.xlu0 %v838, 256
        %v841 = vpop.permute.xlu0 %840
        %v842 = vlaneseq
        %v843 = vshrl.u32 %v842, 7
        %v844 = vsub.s32 7, %v843
        %v845 = vrot.slane %v651, %v844
        %847 = vbcast.lane.b32.xlu0 %v845, 256
        %v848 = vpop.permute.xlu0 %847
        %v849 = vadd.f32 %v785, %v799
        %v850 = vadd.f32 %v786, %v806
        %v851 = vadd.f32 %v787, %v813
        %v852 = vadd.f32 %v788, %v820
        %v853 = vadd.f32 %v789, %v827
        %v854 = vadd.f32 %v790, %v834
        %v855 = vadd.f32 %v791, %v841
        %v856 = vadd.f32 %v792, %v848
        %vm857 = vcmask 64512
        %v858 = vsel %vm857, %v849, -inf
        %859 = vmax.xlane.f32.xlu0 %v858
        %v860 = vpop.xlane.xlu0 %859
        %v861 = vsel %vm857, %v850, -inf
        %862 = vmax.xlane.f32.xlu0 %v861
        %v863 = vpop.xlane.xlu0 %862
        %v864 = vsel %vm857, %v851, -inf
        %865 = vmax.xlane.f32.xlu0 %v864
        %v866 = vpop.xlane.xlu0 %865
        %v867 = vsel %vm857, %v852, -inf
        %868 = vmax.xlane.f32.xlu0 %v867
        %v869 = vpop.xlane.xlu0 %868
        %v870 = vsel %vm857, %v853, -inf
        %871 = vmax.xlane.f32.xlu0 %v870
        %v872 = vpop.xlane.xlu0 %871
        %v873 = vsel %vm857, %v854, -inf
        %874 = vmax.xlane.f32.xlu0 %v873
        %v875 = vpop.xlane.xlu0 %874
        %v876 = vsel %vm857, %v855, -inf
        %877 = vmax.xlane.f32.xlu0 %v876
        %v878 = vpop.xlane.xlu0 %877
        %v879 = vsel %vm857, %v856, -inf
        %880 = vmax.xlane.f32.xlu0 %v879
        %v881 = vpop.xlane.xlu0 %880
        %v882 = vrot.slane %v860, 4
        %v883 = vmax.f32 %v860, %v882
        %v884 = vrot.slane %v883, 2
        %v885 = vmax.f32 %v883, %v884
        %v886 = vrot.slane %v885, 1
        %v887 = vmax.f32 %v885, %v886
        %v888 = vrot.slane %v863, 4
        %v889 = vmax.f32 %v863, %v888
        %v890 = vrot.slane %v889, 2
        %v891 = vmax.f32 %v889, %v890
        %v892 = vrot.slane %v891, 1
        %v893 = vmax.f32 %v891, %v892
        %v894 = vrot.slane %v866, 4
        %v895 = vmax.f32 %v866, %v894
        %v896 = vrot.slane %v895, 2
        %v897 = vmax.f32 %v895, %v896
        %v898 = vrot.slane %v897, 1
        %v899 = vmax.f32 %v897, %v898
        %v900 = vrot.slane %v869, 4
        %v901 = vmax.f32 %v869, %v900
        %v902 = vrot.slane %v901, 2
        %v903 = vmax.f32 %v901, %v902
        %v904 = vrot.slane %v903, 1
        %v905 = vmax.f32 %v903, %v904
        %v906 = vrot.slane %v872, 4
        %v907 = vmax.f32 %v872, %v906
        %v908 = vrot.slane %v907, 2
        %v909 = vmax.f32 %v907, %v908
        %v910 = vrot.slane %v909, 1
        %v911 = vmax.f32 %v909, %v910
        %v912 = vrot.slane %v875, 4
        %v913 = vmax.f32 %v875, %v912
        %v914 = vrot.slane %v913, 2
        %v915 = vmax.f32 %v913, %v914
        %v916 = vrot.slane %v915, 1
        %v917 = vmax.f32 %v915, %v916
        %v918 = vrot.slane %v878, 4
        %v919 = vmax.f32 %v878, %v918
        %v920 = vrot.slane %v919, 2
        %v921 = vmax.f32 %v919, %v920
        %v922 = vrot.slane %v921, 1
        %v923 = vmax.f32 %v921, %v922
        %v924 = vrot.slane %v881, 4
        %v925 = vmax.f32 %v881, %v924
        %v926 = vrot.slane %v925, 2
        %v927 = vmax.f32 %v925, %v926
        %v928 = vrot.slane %v927, 1
        %v929 = vmax.f32 %v927, %v928
        %v930 = vsub.f32 %v849, %v887
        %v931 = vsub.f32 %v850, %v893
        %v932 = vsub.f32 %v851, %v899
        %v933 = vsub.f32 %v852, %v905
        %v934 = vsub.f32 %v853, %v911
        %v935 = vsub.f32 %v854, %v917
        %v936 = vsub.f32 %v855, %v923
        %v937 = vsub.f32 %v856, %v929
        %v938 = vmul.f32 %v930, 1.442695
        %v939 = vpow.pop %v938
        %v940 = vmul.f32 %v931, 1.442695
        %v941 = vpow.pop %v940
        %v942 = vmul.f32 %v932, 1.442695
        %v943 = vpow.pop %v942
        %v944 = vmul.f32 %v933, 1.442695
        %v945 = vpow.pop %v944
        %v946 = vmul.f32 %v934, 1.442695
        %v947 = vpow.pop %v946
        %v948 = vmul.f32 %v935, 1.442695
        %v949 = vpow.pop %v948
        %v950 = vmul.f32 %v936, 1.442695
        %v951 = vpow.pop %v950
        %v952 = vmul.f32 %v937, 1.442695
        %v953 = vpow.pop %v952
        %v954 = vsel %vm857, %v939, 0.0
        %955 = vadd.xlane.f32.xlu0 %v954
        %v956 = vpop.xlane.xlu0 %955
        %v957 = vsel %vm857, %v941, 0.0
        %958 = vadd.xlane.f32.xlu0 %v957
        %v959 = vpop.xlane.xlu0 %958
        %v960 = vsel %vm857, %v943, 0.0
        %961 = vadd.xlane.f32.xlu0 %v960
        %v962 = vpop.xlane.xlu0 %961
        %v963 = vsel %vm857, %v945, 0.0
        %964 = vadd.xlane.f32.xlu0 %v963
        %v965 = vpop.xlane.xlu0 %964
        %v966 = vsel %vm857, %v947, 0.0
        %967 = vadd.xlane.f32.xlu0 %v966
        %v968 = vpop.xlane.xlu0 %967
        %v969 = vsel %vm857, %v949, 0.0
        %970 = vadd.xlane.f32.xlu0 %v969
        %v971 = vpop.xlane.xlu0 %970
        %v972 = vsel %vm857, %v951, 0.0
        %973 = vadd.xlane.f32.xlu0 %v972
        %v974 = vpop.xlane.xlu0 %973
        %v975 = vsel %vm857, %v953, 0.0
        %976 = vadd.xlane.f32.xlu0 %v975
        %v977 = vpop.xlane.xlu0 %976
        %v978 = vrot.slane %v956, 4
        %v979 = vadd.f32 %v956, %v978
        %v980 = vrot.slane %v979, 2
        %v981 = vadd.f32 %v979, %v980
        %v982 = vrot.slane %v981, 1
        %v983 = vadd.f32 %v981, %v982
        %v984 = vrot.slane %v959, 4
        %v985 = vadd.f32 %v959, %v984
        %v986 = vrot.slane %v985, 2
        %v987 = vadd.f32 %v985, %v986
        %v988 = vrot.slane %v987, 1
        %v989 = vadd.f32 %v987, %v988
        %v990 = vrot.slane %v962, 4
        %v991 = vadd.f32 %v962, %v990
        %v992 = vrot.slane %v991, 2
        %v993 = vadd.f32 %v991, %v992
        %v994 = vrot.slane %v993, 1
        %v995 = vadd.f32 %v993, %v994
        %v996 = vrot.slane %v965, 4
        %v997 = vadd.f32 %v965, %v996
        %v998 = vrot.slane %v997, 2
        %v999 = vadd.f32 %v997, %v998
        %v1000 = vrot.slane %v999, 1
        %v1001 = vadd.f32 %v999, %v1000
        %v1002 = vrot.slane %v968, 4
        %v1003 = vadd.f32 %v968, %v1002
        %v1004 = vrot.slane %v1003, 2
        %v1005 = vadd.f32 %v1003, %v1004
        %v1006 = vrot.slane %v1005, 1
        %v1007 = vadd.f32 %v1005, %v1006
        %v1008 = vrot.slane %v971, 4
        %v1009 = vadd.f32 %v971, %v1008
        %v1010 = vrot.slane %v1009, 2
        %v1011 = vadd.f32 %v1009, %v1010
        %v1012 = vrot.slane %v1011, 1
        %v1013 = vadd.f32 %v1011, %v1012
        %v1014 = vrot.slane %v974, 4
        %v1015 = vadd.f32 %v974, %v1014
        %v1016 = vrot.slane %v1015, 2
        %v1017 = vadd.f32 %v1015, %v1016
        %v1018 = vrot.slane %v1017, 1
        %v1019 = vadd.f32 %v1017, %v1018
        %v1020 = vrot.slane %v977, 4
        %v1021 = vadd.f32 %v977, %v1020
        %v1022 = vrot.slane %v1021, 2
        %v1023 = vadd.f32 %v1021, %v1022
        %v1024 = vrot.slane %v1023, 1
        %v1025 = vadd.f32 %v1023, %v1024
        %v1026 = vpack.c.bf16 %v941, %v939
        %v1027 = vpack.c.bf16 %v945, %v943
        %v1028 = vpack.c.bf16 %v949, %v947
        %v1029 = vpack.c.bf16 %v953, %v951
        %1030 = vrot.lane.b32.xlu0 %v588, 80
        %v1031 = vpop.permute.xlu0 %1030
        %v1033 = vsel %vm857, %v1026, 0
        %v1036 = vsel %vm857, %v1027, 0
        %v1039 = vsel %vm857, %v1028, 0
        %v1042 = vsel %vm857, %v1029, 0
        %vm1044 = vcmask 1043456
        %v1046 = vsel %vm1044, %v1031, 0
        %1048 = vmatprep.subr.bf16.mxu0 0
        %1049 = vmatpush1.bf16.msra.mxu0 %v1046
        %1050 = vmatprep.subr.bf16.mxu0 0
        %1051 = vmatpush1.bf16.msra.mxu0 0
        %1052 = vmatprep.subr.bf16.mxu0 0
        %1053 = vmatpush1.bf16.msra.mxu0 0
        %1054 = vmatprep.subr.bf16.mxu0 0
        %1055 = vmatpush1.bf16.msra.mxu0 0
        %1056 = vmatprep.subr.bf16.mxu0 0
        %1057 = vmatpush1.bf16.msra.mxu0 0
        %1058 = vmatprep.subr.bf16.mxu0 0
        %1059 = vmatpush1.bf16.msra.mxu0 0
        %1060 = vmatprep.subr.bf16.mxu0 0
        %1061 = vmatpush1.bf16.msra.mxu0 0
        %1062 = vmatprep.subr.bf16.mxu0 0
        %1063 = vmatpush1.bf16.msra.mxu0 0
        %1064 = vmatprep.subr.bf16.mxu0 0
        %1065 = vmatpush1.bf16.msra.mxu0 0
        %1066 = vmatprep.subr.bf16.mxu0 0
        %1067 = vmatpush1.bf16.msra.mxu0 0
        %1068 = vmatprep.subr.bf16.mxu0 0
        %1069 = vmatpush1.bf16.msra.mxu0 0
        %1070 = vmatprep.subr.bf16.mxu0 0
        %1071 = vmatpush1.bf16.msra.mxu0 0
        %1072 = vmatprep.subr.bf16.mxu0 0
        %1073 = vmatpush1.bf16.msra.mxu0 0
        %1074 = vmatprep.subr.bf16.mxu0 0
        %1075 = vmatpush1.bf16.msra.mxu0 0
        %1076 = vmatprep.subr.bf16.mxu0 0
        %1077 = vmatpush1.bf16.msra.mxu0 0
        %1078 = vmatprep.subr.bf16.mxu0 0
        %1079 = vmatpush1.bf16.msra.mxu0 0
        %1080 = vmatprep.mubr.bf16.mxu0 0
        %1081 = vmatmul.mubr.bf16.gmra.mrb[0].mxu0 %v1033
        %v1082 = vpop.f32.mrb[0].mxu0
        %v1083 = vadd.f32 0.0, %v1082
        %v1084 = vpop.f32.mrb[0].mxu0
        %v1085 = vpop.f32.mrb[0].mxu0
        %v1086 = vadd.f32 0.0, %v1085
        %v1087 = vpop.f32.mrb[0].mxu0
        %1088 = vmatprep.mubr.bf16.mxu0 0
        %1089 = vmatmul.mubr.bf16.gmra.mrb[0].mxu0 %v1036
        %v1090 = vpop.f32.mrb[0].mxu0
        %v1091 = vadd.f32 0.0, %v1090
        %v1092 = vpop.f32.mrb[0].mxu0
        %v1093 = vpop.f32.mrb[0].mxu0
        %v1094 = vadd.f32 0.0, %v1093
        %v1095 = vpop.f32.mrb[0].mxu0
        %1096 = vmatprep.mubr.bf16.mxu0 0
        %1097 = vmatmul.mubr.bf16.gmra.mrb[0].mxu0 %v1039
        %v1098 = vpop.f32.mrb[0].mxu0
        %v1099 = vadd.f32 0.0, %v1098
        %v1100 = vpop.f32.mrb[0].mxu0
        %v1101 = vpop.f32.mrb[0].mxu0
        %v1102 = vadd.f32 0.0, %v1101
        %v1103 = vpop.f32.mrb[0].mxu0
        %1104 = vmatprep.mubr.bf16.mxu0 0
        %1105 = vmatmul.mubr.bf16.gmra.mrb[0].mxu0 %v1042
        %v1106 = vpop.f32.mrb[0].mxu0
        %v1107 = vadd.f32 0.0, %v1106
        %v1108 = vpop.f32.mrb[0].mxu0
        %v1109 = vpop.f32.mrb[0].mxu0
        %v1110 = vadd.f32 0.0, %v1109
        %v1111 = vpop.f32.mrb[0].mxu0
        %1112 = vdwg.mxu0
        %v1113 = vxor.u32 %v527, 2147483648
        %v1114 = vmul.f32 %v1113, 1.442695
        %v1115 = vpow.pop %v1114
        %v1116 = vadd.f32 %v1115, 1.0
        %v1117 = vrcp.pop %v1116
        %v1118 = vmul.f32 1.0, %v1117
        %v1119 = vmul.f32 %v527, %v1118
        %1121 = vrot.lane.b32.xlu0 %v1119, 96
        %v1122 = vpop.permute.xlu0 %1121
        %v1124 = vmul.f32 %v1083, %v1122
        %v1125 = vmul.f32 %v1086, %v1122
        %v1126 = vmul.f32 %v1091, %v1122
        %v1127 = vmul.f32 %v1094, %v1122
        %v1128 = vmul.f32 %v1099, %v1122
        %v1129 = vmul.f32 %v1102, %v1122
        %v1130 = vmul.f32 %v1107, %v1122
        %v1131 = vmul.f32 %v1110, %v1122
        %v1132 = vsel %vm596, %v1124, 0.0
        %v1133 = vrot.slane %v1132, 4
        %v1134 = vadd.f32 %v1132, %v1133
        %v1135 = vrot.slane %v1134, 2
        %v1136 = vadd.f32 %v1134, %v1135
        %v1137 = vrot.slane %v1136, 1
        %v1138 = vadd.f32 %v1136, %v1137
        %v1139 = vsel %vm596, %v1125, 0.0
        %v1140 = vrot.slane %v1139, 4
        %v1141 = vadd.f32 %v1139, %v1140
        %v1142 = vrot.slane %v1141, 2
        %v1143 = vadd.f32 %v1141, %v1142
        %v1144 = vrot.slane %v1143, 1
        %v1145 = vadd.f32 %v1143, %v1144
        %v1146 = vsel %vm596, %v1126, 0.0
        %v1147 = vrot.slane %v1146, 4
        %v1148 = vadd.f32 %v1146, %v1147
        %v1149 = vrot.slane %v1148, 2
        %v1150 = vadd.f32 %v1148, %v1149
        %v1151 = vrot.slane %v1150, 1
        %v1152 = vadd.f32 %v1150, %v1151
        %v1153 = vsel %vm596, %v1127, 0.0
        %v1154 = vrot.slane %v1153, 4
        %v1155 = vadd.f32 %v1153, %v1154
        %v1156 = vrot.slane %v1155, 2
        %v1157 = vadd.f32 %v1155, %v1156
        %v1158 = vrot.slane %v1157, 1
        %v1159 = vadd.f32 %v1157, %v1158
        %v1160 = vsel %vm596, %v1128, 0.0
        %v1161 = vrot.slane %v1160, 4
        %v1162 = vadd.f32 %v1160, %v1161
        %v1163 = vrot.slane %v1162, 2
        %v1164 = vadd.f32 %v1162, %v1163
        %v1165 = vrot.slane %v1164, 1
        %v1166 = vadd.f32 %v1164, %v1165
        %v1167 = vsel %vm596, %v1129, 0.0
        %v1168 = vrot.slane %v1167, 4
        %v1169 = vadd.f32 %v1167, %v1168
        %v1170 = vrot.slane %v1169, 2
        %v1171 = vadd.f32 %v1169, %v1170
        %v1172 = vrot.slane %v1171, 1
        %v1173 = vadd.f32 %v1171, %v1172
        %v1174 = vsel %vm596, %v1130, 0.0
        %v1175 = vrot.slane %v1174, 4
        %v1176 = vadd.f32 %v1174, %v1175
        %v1177 = vrot.slane %v1176, 2
        %v1178 = vadd.f32 %v1176, %v1177
        %v1179 = vrot.slane %v1178, 1
        %v1180 = vadd.f32 %v1178, %v1179
        %v1181 = vsel %vm596, %v1131, 0.0
        %v1182 = vrot.slane %v1181, 4
        %v1183 = vadd.f32 %v1181, %v1182
        %v1184 = vrot.slane %v1183, 2
        %v1185 = vadd.f32 %v1183, %v1184
        %v1186 = vrot.slane %v1185, 1
        %v1187 = vadd.f32 %v1185, %v1186
        %v1188 = vrcp.pop %v983
        %v1189 = vrcp.pop %v989
        %v1190 = vrcp.pop %v995
        %v1191 = vrcp.pop %v1001
        %v1192 = vrcp.pop %v1007
        %v1193 = vrcp.pop %v1013
        %v1194 = vrcp.pop %v1019
        %v1195 = vrcp.pop %v1025
        %v1196 = vmul.f32 %v1138, %v1188
        %v1197 = vmul.f32 %v1145, %v1189
        %v1198 = vmul.f32 %v1152, %v1190
        %v1199 = vmul.f32 %v1159, %v1191
        %v1200 = vmul.f32 %v1166, %v1192
        %v1201 = vmul.f32 %v1173, %v1193
        %v1202 = vmul.f32 %v1180, %v1194
        %v1203 = vmul.f32 %v1187, %v1195
        %p1204 = scmp.eq.s32.totalorder %s35, 0
        // Predicated region
        $region61: #{tpu_custom_call.1} parent=51 // pred_check
          %p1205 = pneg %p1204
        $region62: #{tpu_custom_call.1} parent=51 // pred_check_branch
          %1207 = sbr.rel (%p1205) target = $region64
        $region63: #{tpu_custom_call.1} parent=51 // pred_region
          %v1208 = vld [vmem:[%s7] sm:$0x1]
          %v1210 = vlaneseq
          %v1211 = vshrl.u32 %v1210, 7
          %v1212 = vsub.s32 0, %v1211
          %v1213 = vrot.slane %v1208, %v1212
          %1215 = vst.msk [vmem:[%s448] sm:$0xff] %vm488, %v1213
        $region64: #{tpu_custom_call.1} parent=51 // pred_fallthru
          _
        %v1216 = vld [vmem:[%s448] sm:$0xff]
        %v1217 = vpack.c.bf16 %v1196, %v1196
        %v1218 = vpack.c.bf16 %v1197, %v1197
        %v1219 = vpack.c.bf16 %v1198, %v1198
        %v1220 = vpack.c.bf16 %v1199, %v1199
        %v1221 = vpack.c.bf16 %v1200, %v1200
        %v1222 = vpack.c.bf16 %v1201, %v1201
        %v1223 = vpack.c.bf16 %v1202, %v1202
        %v1224 = vpack.c.bf16 %v1203, %v1203
        %v1225 = vld [vmem:[%s469] sm:$0xff]
        %v1226 = vld [vmem:[%s469 + $0x8] sm:$0xff]
        %v1227 = vpack.c.bf16 %v1226, %v1225
        %v1236 = vunpack.c.l.b16 %v1217
        %v1237 = vunpack.c.l.b16 %v1218
        %v1238 = vunpack.c.l.b16 %v1219
        %v1239 = vunpack.c.l.b16 %v1220
        %v1240 = vunpack.c.l.b16 %v1221
        %v1241 = vunpack.c.l.b16 %v1222
        %v1242 = vunpack.c.l.b16 %v1223
        %v1243 = vunpack.c.l.b16 %v1224
        %vm1244 = vcmask 1041409
        %v1245 = vsel %vm1244, %v1237, %v1236
        %vm1246 = vcmask 1042434
        %v1247 = vsel %vm1246, %v1238, %v1245
        %vm1248 = vcmask 1043459
        %v1249 = vsel %vm1248, %v1239, %v1247
        %vm1250 = vcmask 1044484
        %v1251 = vsel %vm1250, %v1240, %v1249
        %vm1252 = vcmask 1045509
        %v1253 = vsel %vm1252, %v1241, %v1251
        %vm1254 = vcmask 1046534
        %v1255 = vsel %vm1254, %v1242, %v1253
        %vm1256 = vcmask 1047559
        %v1257 = vsel %vm1256, %v1243, %v1255
        %v1258 = vpack.c.b16 %v1257, %v1257
        %v1260 = vsel %vm596, %v1258, 0
        %1262 = vmatprep.subr.bf16.mxu0 0
        %1263 = vmatpush1.bf16.msra.mxu0 %v1227
        %1264 = vmatprep.subr.bf16.mxu0 0
        %1265 = vmatpush1.bf16.msra.mxu0 0
        %1266 = vmatprep.subr.bf16.mxu0 0
        %1267 = vmatpush1.bf16.msra.mxu0 0
        %1268 = vmatprep.subr.bf16.mxu0 0
        %1269 = vmatpush1.bf16.msra.mxu0 0
        %1270 = vmatprep.subr.bf16.mxu0 0
        %1271 = vmatpush1.bf16.msra.mxu0 0
        %1272 = vmatprep.subr.bf16.mxu0 0
        %1273 = vmatpush1.bf16.msra.mxu0 0
        %1274 = vmatprep.subr.bf16.mxu0 0
        %1275 = vmatpush1.bf16.msra.mxu0 0
        %1276 = vmatprep.subr.bf16.mxu0 0
        %1277 = vmatpush1.bf16.msra.mxu0 0
        %1278 = vmatprep.subr.bf16.mxu0 0
        %1279 = vmatpush1.bf16.msra.mxu0 0
        %1280 = vmatprep.subr.bf16.mxu0 0
        %1281 = vmatpush1.bf16.msra.mxu0 0
        %1282 = vmatprep.subr.bf16.mxu0 0
        %1283 = vmatpush1.bf16.msra.mxu0 0
        %1284 = vmatprep.subr.bf16.mxu0 0
        %1285 = vmatpush1.bf16.msra.mxu0 0
        %1286 = vmatprep.subr.bf16.mxu0 0
        %1287 = vmatpush1.bf16.msra.mxu0 0
        %1288 = vmatprep.subr.bf16.mxu0 0
        %1289 = vmatpush1.bf16.msra.mxu0 0
        %1290 = vmatprep.subr.bf16.mxu0 0
        %1291 = vmatpush1.bf16.msra.mxu0 0
        %1292 = vmatprep.subr.bf16.mxu0 0
        %1293 = vmatpush1.bf16.msra.mxu0 0
        %1294 = vmatprep.mubr.bf16.mxu0 0
        %1295 = vmatmul.mubr.bf16.gmra.mrb[0].mxu0 %v1260
        %v1296 = vpop.f32.mrb[0].mxu0
        %v1297 = vadd.f32 0.0, %v1296
        %v1298 = vpop.f32.mrb[0].mxu0
        %v1299 = vpop.f32.mrb[0].mxu0
        %v1300 = vpop.f32.mrb[0].mxu0
        %1301 = vdwg.mxu0
        %v1302 = vadd.f32 %v1216, %v1297
        %1303 = vst.msk [vmem:[%s448] sm:$0xff] %vm488, %v1302
        %s1304 = sand.u32 %s262, 1
        %s1305 = scalar_lea.sflag [#allocation4], %s1304
        %s1306 = sand.u32 %s262, 1
        %s1307 = smul.addr %s1306, 8
        %s1308 = scalar_lea.vmem [#allocation7], %s1307
        // Predicated region
        $region65: #{tpu_custom_call.1} parent=51 // pred_check
          %p1309 = pneg %p272
        $region66: #{tpu_custom_call.1} parent=51 // pred_check_branch
          %1311 = sbr.rel (%p1309) target = $region68
        $region67: #{tpu_custom_call.1} parent=51 // pred_region
          %s1313 = ssub.s32 128, 128
          %1314 = vsyncadd %s1305, %s1313
          %s1315 = sadd.s32 %s34, %s33
          %s1316 = smul.addr %s1315, 128
          %s1317 = scalar_lea.hbm %s8, %s1316
          %s1319 = sshll.u32 %s1308, 4
          %s1320 = int_to_ptr.vmem [resolvable:$true] %s1319
          %1322 = dma.vmem_to_hbm [thread:$0]  %s1320, 128, %s1317, %s1305
        $region68: #{tpu_custom_call.1} parent=51 // pred_fallthru
          _
      $region52: #{tpu_custom_call.1} parent=5 // pred_fallthru
        _
      %p1323 = scmp.le.s32.totalorder 2, %s23
      // Predicated region
      $region69: #{tpu_custom_call.1} parent=5 // pred_check
        %p1324 = pneg %p1323
      $region70: #{tpu_custom_call.1} parent=5 // pred_check_branch
        %1326 = sbr.rel (%p1324) target = $region72
      $region71: #{tpu_custom_call.1} parent=5 // pred_region
        %s1327 = ssub.s32 %s23, 2
        // Predicated region
        $region73: #{tpu_custom_call.1} parent=71 // pred_check
          %p1328 = pneg %p278
        $region74: #{tpu_custom_call.1} parent=71 // pred_check_branch
          %1330 = sbr.rel (%p1328) target = $region76
        $region75: #{tpu_custom_call.1} parent=71 // pred_region
          %s1331 = sand.u32 %s263, 1
          %s1332 = scalar_lea.sflag [#allocation4], %s1331
          %s1333 = sand.u32 %s263, 1
          %s1334 = smul.addr %s1333, 8
          %s1335 = scalar_lea.vmem [#allocation7], %s1334
          %1336 = dma.done %s1332, 128
        $region76: #{tpu_custom_call.1} parent=71 // pred_fallthru
          _
      $region72: #{tpu_custom_call.1} parent=5 // pred_fallthru
        _
    $region6: #{tpu_custom_call.1} parent=1 // loop_footer
      %s27 = sadd.s32 1, %s23
    $region7: #{tpu_custom_call.1} parent=1 // loop_footer_branch
      %22 = sbr.rel target = $region3
    $region8: #{tpu_custom_call.1} parent=1 // loop_exit
      _
    %1337 = vsyncpa [#allocation3], 1
    %s1338 = scalar_lea.sflag [#allocation3], 1
    %1339 = vsyncpa %s1338, 1
    %1340 = vsyncpa [#allocation6], 1
    %s1341 = scalar_lea.sflag [#allocation6], 1
    %1342 = vsyncpa %s1341, 1
    %1343 = vsyncpa [#allocation4], 1
    %s1344 = scalar_lea.sflag [#allocation4], 1
    %1345 = vsyncpa %s1344, 1

</llo_original>
